<compile_context>
chip_gen: v7x
topology: tpu7x:2x2x1
jax: 0.10.0
libtpu: 0.0.40
codegen_flags: <defaults>
</compile_context>

<pallas_src>
import jax
import jax.numpy as jnp
from jax.experimental import pallas as pl
from jax.experimental.pallas import tpu as pltpu


H_PAD = 128  # hidden size 100 padded to one full 128-lane vreg


def _round_up(x, m):
    return (x + m - 1) // m * m


def _disc_kernel(x_ref, y_ref, w1x_ref, w1y_ref, b1_ref, w2_ref, b2_ref,
                 w3_ref, b3_ref, out_ref):
    """Fused 3-layer MLP for one batch tile (all refs are full VMEM blocks)."""
    # Layer 1: split-K over the (x, y) concat (concat never hits HBM).
    h1 = jnp.dot(x_ref[...], w1x_ref[...], preferred_element_type=jnp.float32)
    h1 = h1 + jnp.dot(y_ref[...], w1y_ref[...], preferred_element_type=jnp.float32)
    h1 = jnp.maximum(h1 + b1_ref[...], 0.0)                       # (BT, 128) f32

    # Layer 2: bf16 MXU matmul, f32 accumulate, f32 bias + ReLU on the VPU.
    h2 = jnp.dot(h1.astype(jnp.bfloat16), w2_ref[...],
                 preferred_element_type=jnp.float32)
    h2 = jnp.maximum(h2 + b2_ref[...], 0.0)                       # (BT, 128) f32

    # Layer 3 (100 -> 1): VPU multiply + lane reduction instead of an N=1 MXU matmul.
    # Broadcast the per-row scalar across all 128 lanes for a lane-dense store.
    h3 = jnp.sum(h2 * w3_ref[...], axis=-1, keepdims=True)        # (BT, 1)  f32
    out_ref[...] = (jnp.broadcast_to(h3, out_ref.shape)
                    + b3_ref[...]).astype(out_ref.dtype)


def prepare_params(params, dx, hidden_pad=H_PAD):
    """Pad hidden dim to 128, split W1 over the (x, y) concat, cast MXU operands to bf16."""
    w1, b1, w2, b2, w3, b3 = params          # [in, out] layout, f32, hidden=100, out=1
    n_in, h = w1.shape

    w1p = jnp.zeros((n_in, hidden_pad), jnp.float32).at[:, :h].set(w1)
    b1p = jnp.zeros((1, hidden_pad), jnp.float32).at[:, :h].set(b1)
    w2p = jnp.zeros((hidden_pad, hidden_pad), jnp.float32).at[:h, :h].set(w2)
    b2p = jnp.zeros((1, hidden_pad), jnp.float32).at[:, :h].set(b2)
    w3p = jnp.zeros((1, hidden_pad), jnp.float32).at[0, :h].set(w3[:, 0])  # row vector
    b3p = jnp.full((1, hidden_pad), b3[0, 0], jnp.float32)                 # broadcast value

    w1x = w1p[:dx].astype(jnp.bfloat16)      # (dx, 128)
    w1y = w1p[dx:].astype(jnp.bfloat16)      # (dy, 128)
    w2b = w2p.astype(jnp.bfloat16)           # (128, 128)
    return w1x, w1y, b1p, w2b, b2p, w3p, b3p


def discriminator_forward(x, y, params, *, block_b=256, hidden_pad=H_PAD):
    """JAX wrapper reproducing Discriminator.forward(x, y): (B, dx), (B, dy) -> (B, 1)."""
    B, dx = x.shape
    dy = y.shape[1]
    w1x, w1y, b1p, w2b, b2p, w3p, b3p = prepare_params(params, dx, hidden_pad)

    # Batch tile: multiple of 16 (bf16 sublane pack), capped at block_b; pad batch.
    bt = min(block_b, _round_up(B, 16))
    b_pad = _round_up(B, bt)
    x_b = jnp.pad(x.astype(jnp.bfloat16), ((0, b_pad - B), (0, 0)))
    y_b = jnp.pad(y.astype(jnp.bfloat16), ((0, b_pad - B), (0, 0)))

    n_in = dx + dy
    flops = 2 * b_pad * (n_in * hidden_pad + hidden_pad * hidden_pad + hidden_pad)
    bytes_accessed = (
        b_pad * n_in * 2                                     # streamed bf16 activations
        + (n_in * hidden_pad + hidden_pad * hidden_pad) * 2  # bf16 weights
        + 4 * hidden_pad * 4                                 # f32 bias / w3 rows
        + b_pad * hidden_pad * 4                             # f32 lane-dense output
    )

    def weight_spec(shape):
        return pl.BlockSpec(shape, lambda i: (0, 0))         # VMEM-resident across grid

    out = pl.pallas_call(
        _disc_kernel,
        out_shape=jax.ShapeDtypeStruct((b_pad, hidden_pad), jnp.float32),
        grid=(b_pad // bt,),
        in_specs=[
            pl.BlockSpec((bt, dx), lambda i: (i, 0)),        # x tile (streamed)
            pl.BlockSpec((bt, dy), lambda i: (i, 0)),        # y tile (streamed)
            weight_spec((dx, hidden_pad)),                   # W1x
            weight_spec((dy, hidden_pad)),                   # W1y
            weight_spec((1, hidden_pad)),                    # b1
            weight_spec((hidden_pad, hidden_pad)),           # W2
            weight_spec((1, hidden_pad)),                    # b2
            weight_spec((1, hidden_pad)),                    # w3 row
            weight_spec((1, hidden_pad)),                    # b3 (broadcast)
        ],
        out_specs=pl.BlockSpec((bt, hidden_pad), lambda i: (i, 0)),
        compiler_params=pltpu.CompilerParams(dimension_semantics=("parallel",)),
        cost_estimate=pl.CostEstimate(flops=flops, transcendentals=0,
                                      bytes_accessed=bytes_accessed),
    )(x_b, y_b, w1x, w1y, b1p, w2b, b2p, w3p, b3p)

    return out[:B, :1]


def init_params(key, n_inputs, hidden=100, out=1):
    """Deterministic synthetic parameters (PyTorch-Linear init, stored as [in, out])."""
    ks = jax.random.split(key, 6)
    s1 = 1.0 / jnp.sqrt(n_inputs)
    s2 = 1.0 / jnp.sqrt(hidden)
    w1 = jax.random.uniform(ks[0], (n_inputs, hidden), jnp.float32, -s1, s1)
    b1 = jax.random.uniform(ks[1], (1, hidden), jnp.float32, -s1, s1)
    w2 = jax.random.uniform(ks[2], (hidden, hidden), jnp.float32, -s2, s2)
    b2 = jax.random.uniform(ks[3], (1, hidden), jnp.float32, -s2, s2)
    w3 = jax.random.uniform(ks[4], (hidden, out), jnp.float32, -s2, s2)
    b3 = jax.random.uniform(ks[5], (1, out), jnp.float32, -s2, s2)
    return (w1, b1, w2, b2, w3, b3)


if __name__ == "__main__":
    key = jax.random.PRNGKey(0)
    kx, ky, kp = jax.random.split(key, 3)

    B, dx, dy = 512, 16, 16            # n_inputs = dx + dy = 32
    n_inputs = dx + dy

    x = jax.random.normal(kx, (B, dx), jnp.float32)
    y = jax.random.normal(ky, (B, dy), jnp.float32)
    params = init_params(kp, n_inputs)

    out = discriminator_forward(x, y, params)
    jax.block_until_ready(out)

    # Pure-f32 JAX reference of the original torch math (bf16 MXU operands in the
    # kernel => loosened tolerance; f32 accumulation keeps the error ~1e-2).
    w1, b1, w2, b2, w3, b3 = params
    xy = jnp.concatenate([x, y], axis=1)
    ref = jnp.maximum(xy @ w1 + b1, 0.0)
    ref = jnp.maximum(ref @ w2 + b2, 0.0)
    ref = ref @ w3 + b3

    assert out.shape == (B, 1)
    assert jnp.allclose(out, ref, atol=7.5e-2, rtol=7.5e-2), (
        float(jnp.max(jnp.abs(out - ref))))

    print("KERNEL_OK")
</pallas_src>

<mosaic_0001>
module attributes {stable_mosaic.version = 11 : i64} {
  func.func @_disc_kernel(%arg0: i32, %arg1: memref<256x16xbf16, #tpu.memory_space<vmem>>, %arg2: memref<256x16xbf16, #tpu.memory_space<vmem>>, %arg3: memref<16x128xbf16, #tpu.memory_space<vmem>>, %arg4: memref<16x128xbf16, #tpu.memory_space<vmem>>, %arg5: memref<1x128xf32, #tpu.memory_space<vmem>>, %arg6: memref<128x128xbf16, #tpu.memory_space<vmem>>, %arg7: memref<1x128xf32, #tpu.memory_space<vmem>>, %arg8: memref<1x128xf32, #tpu.memory_space<vmem>>, %arg9: memref<1x128xf32, #tpu.memory_space<vmem>>, %arg10: memref<256x128xf32, #tpu.memory_space<vmem>>) attributes {dimension_semantics = [#tpu.dimension_semantics<parallel>], iteration_bounds = array<i64: 2>, scalar_prefetch = 0 : i64, scratch_operands = 0 : i64, tpu.core_type = #tpu.core_type<tc>, window_params = [{transform_indices = @transform_0, window_bounds = array<i64: 256, 16>}, {transform_indices = @transform_1, window_bounds = array<i64: 256, 16>}, {pipeline_mode = #tpu.pipeline_mode<synchronous>, transform_indices = @transform_2, window_bounds = array<i64: 16, 128>}, {pipeline_mode = #tpu.pipeline_mode<synchronous>, transform_indices = @transform_3, window_bounds = array<i64: 16, 128>}, {pipeline_mode = #tpu.pipeline_mode<synchronous>, transform_indices = @transform_4, window_bounds = array<i64: 1, 128>}, {pipeline_mode = #tpu.pipeline_mode<synchronous>, transform_indices = @transform_5, window_bounds = array<i64: 128, 128>}, {pipeline_mode = #tpu.pipeline_mode<synchronous>, transform_indices = @transform_6, window_bounds = array<i64: 1, 128>}, {pipeline_mode = #tpu.pipeline_mode<synchronous>, transform_indices = @transform_7, window_bounds = array<i64: 1, 128>}, {pipeline_mode = #tpu.pipeline_mode<synchronous>, transform_indices = @transform_8, window_bounds = array<i64: 1, 128>}, {transform_indices = @transform_9, window_bounds = array<i64: 256, 128>}]} {
    %c0 = arith.constant 0 : index
    %c0_0 = arith.constant 0 : index
    %0 = vector.load %arg1[%c0, %c0_0] : memref<256x16xbf16, #tpu.memory_space<vmem>>, vector<256x16xbf16>
    %c0_1 = arith.constant 0 : index
    %c0_2 = arith.constant 0 : index
    %1 = vector.load %arg3[%c0_1, %c0_2] : memref<16x128xbf16, #tpu.memory_space<vmem>>, vector<16x128xbf16>
    %cst = arith.constant dense<0.000000e+00> : vector<256x128xf32>
    %2 = tpu.matmul %0, %1, %cst {dimension_numbers = #tpu.dot_dimension_numbers<[1], [0], [0], [1], [0, 0, 1, 1], [], []>} : vector<256x16xbf16>, vector<16x128xbf16>, vector<256x128xf32> -> vector<256x128xf32>
    %c0_3 = arith.constant 0 : index
    %c0_4 = arith.constant 0 : index
    %3 = vector.load %arg2[%c0_3, %c0_4] : memref<256x16xbf16, #tpu.memory_space<vmem>>, vector<256x16xbf16>
    %c0_5 = arith.constant 0 : index
    %c0_6 = arith.constant 0 : index
    %4 = vector.load %arg4[%c0_5, %c0_6] : memref<16x128xbf16, #tpu.memory_space<vmem>>, vector<16x128xbf16>
    %cst_7 = arith.constant dense<0.000000e+00> : vector<256x128xf32>
    %5 = tpu.matmul %3, %4, %cst_7 {dimension_numbers = #tpu.dot_dimension_numbers<[1], [0], [0], [1], [0, 0, 1, 1], [], []>} : vector<256x16xbf16>, vector<16x128xbf16>, vector<256x128xf32> -> vector<256x128xf32>
    %6 = arith.addf %2, %5 : vector<256x128xf32>
    %c0_8 = arith.constant 0 : index
    %c0_9 = arith.constant 0 : index
    %7 = vector.load %arg5[%c0_8, %c0_9] : memref<1x128xf32, #tpu.memory_space<vmem>>, vector<1x128xf32>
    %8 = vector.broadcast %7 : vector<1x128xf32> to vector<256x128xf32>
    %9 = arith.addf %6, %8 : vector<256x128xf32>
    %cst_10 = arith.constant 0.000000e+00 : f32
    %10 = vector.broadcast %cst_10 : f32 to vector<256x128xf32>
    %11 = arith.maximumf %9, %10 : vector<256x128xf32>
    %12 = arith.truncf %11 : vector<256x128xf32> to vector<256x128xbf16>
    %c0_11 = arith.constant 0 : index
    %c0_12 = arith.constant 0 : index
    %13 = vector.load %arg6[%c0_11, %c0_12] : memref<128x128xbf16, #tpu.memory_space<vmem>>, vector<128x128xbf16>
    %cst_13 = arith.constant dense<0.000000e+00> : vector<256x128xf32>
    %14 = tpu.matmul %12, %13, %cst_13 {dimension_numbers = #tpu.dot_dimension_numbers<[1], [0], [0], [1], [0, 0, 1, 1], [], []>} : vector<256x128xbf16>, vector<128x128xbf16>, vector<256x128xf32> -> vector<256x128xf32>
    %c0_14 = arith.constant 0 : index
    %c0_15 = arith.constant 0 : index
    %15 = vector.load %arg7[%c0_14, %c0_15] : memref<1x128xf32, #tpu.memory_space<vmem>>, vector<1x128xf32>
    %16 = vector.broadcast %15 : vector<1x128xf32> to vector<256x128xf32>
    %17 = arith.addf %14, %16 : vector<256x128xf32>
    %cst_16 = arith.constant 0.000000e+00 : f32
    %18 = vector.broadcast %cst_16 : f32 to vector<256x128xf32>
    %19 = arith.maximumf %17, %18 : vector<256x128xf32>
    %c0_17 = arith.constant 0 : index
    %c0_18 = arith.constant 0 : index
    %20 = vector.load %arg8[%c0_17, %c0_18] : memref<1x128xf32, #tpu.memory_space<vmem>>, vector<1x128xf32>
    %21 = vector.broadcast %20 : vector<1x128xf32> to vector<256x128xf32>
    %22 = arith.mulf %19, %21 : vector<256x128xf32>
    %cst_19 = arith.constant dense<0.000000e+00> : vector<256xf32>
    %23 = vector.multi_reduction <add>, %22, %cst_19 [1] : vector<256x128xf32> to vector<256xf32>
    %24 = vector.shape_cast %23 : vector<256xf32> to vector<256x1xf32>
    %25 = vector.shape_cast %24 : vector<256x1xf32> to vector<256x1xf32>
    %26 = vector.broadcast %25 : vector<256x1xf32> to vector<256x128xf32>
    %c0_20 = arith.constant 0 : index
    %c0_21 = arith.constant 0 : index
    %27 = vector.load %arg9[%c0_20, %c0_21] : memref<1x128xf32, #tpu.memory_space<vmem>>, vector<1x128xf32>
    %28 = vector.broadcast %27 : vector<1x128xf32> to vector<256x128xf32>
    %29 = arith.addf %26, %28 : vector<256x128xf32>
    %c0_22 = arith.constant 0 : index
    %c0_23 = arith.constant 0 : index
    %30 = vector.load %arg10[%c0_22, %c0_23] : memref<256x128xf32, #tpu.memory_space<vmem>>, vector<256x128xf32>
    tpu.vector_store %arg10[%c0_22, %c0_23], %29 {strides = array<i32>} : memref<256x128xf32, #tpu.memory_space<vmem>>, vector<256x128xf32>,
    return
  }
  func.func @transform_0(%arg0: i32) -> (i32, i32) {
    %c0_i32 = arith.constant 0 : i32
    %c0_i32_0 = arith.constant 0 : i32
    return %arg0, %c0_i32 : i32, i32
  }
  func.func @transform_1(%arg0: i32) -> (i32, i32) {
    %c0_i32 = arith.constant 0 : i32
    %c0_i32_0 = arith.constant 0 : i32
    return %arg0, %c0_i32 : i32, i32
  }
  func.func @transform_2(%arg0: i32) -> (i32, i32) {
    %c0_i32 = arith.constant 0 : i32
    %c0_i32_0 = arith.constant 0 : i32
    %c0_i32_1 = arith.constant 0 : i32
    return %c0_i32, %c0_i32_0 : i32, i32
  }
  func.func @transform_3(%arg0: i32) -> (i32, i32) {
    %c0_i32 = arith.constant 0 : i32
    %c0_i32_0 = arith.constant 0 : i32
    %c0_i32_1 = arith.constant 0 : i32
    return %c0_i32, %c0_i32_0 : i32, i32
  }
  func.func @transform_4(%arg0: i32) -> (i32, i32) {
    %c0_i32 = arith.constant 0 : i32
    %c0_i32_0 = arith.constant 0 : i32
    %c0_i32_1 = arith.constant 0 : i32
    return %c0_i32, %c0_i32_0 : i32, i32
  }
  func.func @transform_5(%arg0: i32) -> (i32, i32) {
    %c0_i32 = arith.constant 0 : i32
    %c0_i32_0 = arith.constant 0 : i32
    %c0_i32_1 = arith.constant 0 : i32
    return %c0_i32, %c0_i32_0 : i32, i32
  }
  func.func @transform_6(%arg0: i32) -> (i32, i32) {
    %c0_i32 = arith.constant 0 : i32
    %c0_i32_0 = arith.constant 0 : i32
    %c0_i32_1 = arith.constant 0 : i32
    return %c0_i32, %c0_i32_0 : i32, i32
  }
  func.func @transform_7(%arg0: i32) -> (i32, i32) {
    %c0_i32 = arith.constant 0 : i32
    %c0_i32_0 = arith.constant 0 : i32
    %c0_i32_1 = arith.constant 0 : i32
    return %c0_i32, %c0_i32_0 : i32, i32
  }
  func.func @transform_8(%arg0: i32) -> (i32, i32) {
    %c0_i32 = arith.constant 0 : i32
    %c0_i32_0 = arith.constant 0 : i32
    %c0_i32_1 = arith.constant 0 : i32
    return %c0_i32, %c0_i32_0 : i32, i32
  }
  func.func @transform_9(%arg0: i32) -> (i32, i32) {
    %c0_i32 = arith.constant 0 : i32
    %c0_i32_0 = arith.constant 0 : i32
    return %arg0, %c0_i32 : i32, i32
  }
}

</mosaic_0001>

<llo_original>
// kernel: tpu_custom_call.1
$region0: #{tpu_custom_call.1}
  #allocation0 [shape = 'u32[]', space=smem, size = 0x4, offset = 0x4, fixed_abs, tag = 'smem constant byte address 0x4 - core index']
  #allocation1 [shape = 'u32[144,128]{1,0:T(1,128)}', space=vmem, size = 0x12000, scoped, tag = 'internal scratch']
  %s0 = inlined_call_operand.vmem [shape: bf16[512,16], index: 0, kind: input, shape index: {}]
  %s1 = inlined_call_operand.vmem [shape: bf16[512,16], index: 1, kind: input, shape index: {}]
  %s2 = inlined_call_operand.vmem [shape: bf16[16,128], index: 2, kind: input, shape index: {}]
  %s3 = inlined_call_operand.vmem [shape: bf16[16,128], index: 3, kind: input, shape index: {}]
  %s4 = inlined_call_operand.vmem [shape: f32[1,128], index: 4, kind: input, shape index: {}]
  %s5 = inlined_call_operand.vmem [shape: bf16[128,128], index: 5, kind: input, shape index: {}]
  %s6 = inlined_call_operand.vmem [shape: f32[1,128], index: 6, kind: input, shape index: {}]
  %s7 = inlined_call_operand.vmem [shape: f32[1,128], index: 7, kind: input, shape index: {}]
  %s8 = inlined_call_operand.vmem [shape: f32[1,128], index: 8, kind: input, shape index: {}]
  %s9 = inlined_call_operand.hbm [shape: f32[512,128], index: 9, kind: output, shape index: {}]
  %s10 = sld [smem:[#allocation0]]
  $region69: #{tpu_custom_call.1} parent=0
    _
  %s12 = ssub.s32 1, %s10
  %s13 = scalar_select 0, %s12, %s10
  $region1: #{tpu_custom_call.1} parent=0
    #allocation2 [shape = 'u8[262144]{0}', space=vmem, size = 0x40000, scoped, tag = 'output window, operand 0']
    #allocation3 [shape = 's32[2]{0}', space=sflag, size = 0x8, scoped, tag = 'scoped memory for tpu_custom_call.1']
    %14 = vsyncpa [#allocation3], 0
    %s15 = scalar_lea.sflag [#allocation3], 1
    %16 = vsyncpa %s15, 0
    loop: start=0, step=1, limit=4
    $region2: #{tpu_custom_call.1} parent=1 // loop_pre_header
      _
    $region3: #{tpu_custom_call.1} parent=1 // loop_header
      %s18 = sphi 0, %s22
      %p19 = scmp.ge.s32.totalorder %s18, 4
      %s28 = sphi 0, %s30
      %s31 = sphi 0, %s28
      %s32 = sphi 0, %s31
      %s48 = sphi 0, %s32
      %s54 = sphi 0, %s56
      %s57 = sphi 0, %s54
      %s58 = sphi 0, %s57
      %s74 = sphi 0, %s58
      %s78 = sphi 0, %s78
      %s80 = sphi 0, %s78
      %s81 = sphi 0, %s80
      %s95 = sphi 0, %s81
      %s99 = sphi 0, %s99
      %s101 = sphi 0, %s99
      %s102 = sphi 0, %s101
      %s116 = sphi 0, %s102
      %s120 = sphi 0, %s120
      %s122 = sphi 0, %s120
      %s123 = sphi 0, %s122
      %s137 = sphi 0, %s123
      %s141 = sphi 0, %s141
      %s143 = sphi 0, %s141
      %s144 = sphi 0, %s143
      %s158 = sphi 0, %s144
      %s162 = sphi 0, %s162
      %s164 = sphi 0, %s162
      %s165 = sphi 0, %s164
      %s179 = sphi 0, %s165
      %s183 = sphi 0, %s183
      %s185 = sphi 0, %s183
      %s186 = sphi 0, %s185
      %s200 = sphi 0, %s186
      %s204 = sphi 0, %s204
      %s206 = sphi 0, %s204
      %s207 = sphi 0, %s206
      %s221 = sphi 0, %s207
      %s227 = sphi 0, %s229
      %s230 = sphi 0, %s227
      %s231 = sphi 0, %s230
      %s247 = sphi 0, %s231
    $region4: #{tpu_custom_call.1} parent=1 // loop_header_branch
      %21 = sbr.rel (%p19) target = $region8
    $region5: #{tpu_custom_call.1} parent=1 // loop_body
      %s23 = ssub.s32 %s18, 1
      %s24 = ssub.s32 %s18, 2
      %s25 = sadd.s32 %s18, 1
      %s26 = ssub.s32 %s18, %s25
      %p27 = scmp.eq.s32.totalorder %s26, 0
      %s29 = sadd.s32 %s28, 1
      %s30 = scalar_select %p27, %s28, %s29
      %p33 = pneg %p27
      %p34 = scmp.eq.s32.totalorder %s18, 1
      %p35 = por %p33, %p34
      %p36 = scmp.ne.s32.totalorder %s28, %s31
      %p37 = scmp.eq.s32.totalorder %s18, 0
      %p38 = por %p36, %p37
      %p39 = scmp.ne.s32.totalorder %s28, %s31
      %p40 = scmp.eq.s32.totalorder %s23, 1
      %p41 = por %p39, %p40
      %p42 = scmp.ne.s32.totalorder %s31, %s32
      %p43 = scmp.eq.s32.totalorder %s23, 0
      %p44 = por %p42, %p43
      %p45 = scmp.ne.s32.totalorder %s31, %s32
      %p46 = scmp.eq.s32.totalorder %s24, 1
      %p47 = por %p45, %p46
      %p49 = scmp.ne.s32.totalorder %s32, %s48
      %p50 = scmp.eq.s32.totalorder %s24, 0
      %p51 = por %p49, %p50
      %s52 = ssub.s32 %s18, %s25
      %p53 = scmp.eq.s32.totalorder %s52, 0
      %s55 = sadd.s32 %s54, 1
      %s56 = scalar_select %p53, %s54, %s55
      %p59 = pneg %p53
      %p60 = scmp.eq.s32.totalorder %s18, 1
      %p61 = por %p59, %p60
      %p62 = scmp.ne.s32.totalorder %s54, %s57
      %p63 = scmp.eq.s32.totalorder %s18, 0
      %p64 = por %p62, %p63
      %p65 = scmp.ne.s32.totalorder %s54, %s57
      %p66 = scmp.eq.s32.totalorder %s23, 1
      %p67 = por %p65, %p66
      %p68 = scmp.ne.s32.totalorder %s57, %s58
      %p69 = scmp.eq.s32.totalorder %s23, 0
      %p70 = por %p68, %p69
      %p71 = scmp.ne.s32.totalorder %s57, %s58
      %p72 = scmp.eq.s32.totalorder %s24, 1
      %p73 = por %p71, %p72
      %p75 = scmp.ne.s32.totalorder %s58, %s74
      %p76 = scmp.eq.s32.totalorder %s24, 0
      %p77 = por %p75, %p76
      %s79 = sadd.s32 %s78, 1
      %p82 = scmp.eq.s32.totalorder %s18, 1
      %p83 = scmp.ne.s32.totalorder %s78, %s80
      %p84 = scmp.eq.s32.totalorder %s18, 0
      %p85 = por %p83, %p84
      %p86 = scmp.ne.s32.totalorder %s78, %s80
      %p87 = scmp.eq.s32.totalorder %s23, 1
      %p88 = por %p86, %p87
      %p89 = scmp.ne.s32.totalorder %s80, %s81
      %p90 = scmp.eq.s32.totalorder %s23, 0
      %p91 = por %p89, %p90
      %p92 = scmp.ne.s32.totalorder %s80, %s81
      %p93 = scmp.eq.s32.totalorder %s24, 1
      %p94 = por %p92, %p93
      %p96 = scmp.ne.s32.totalorder %s81, %s95
      %p97 = scmp.eq.s32.totalorder %s24, 0
      %p98 = por %p96, %p97
      %s100 = sadd.s32 %s99, 1
      %p103 = scmp.eq.s32.totalorder %s18, 1
      %p104 = scmp.ne.s32.totalorder %s99, %s101
      %p105 = scmp.eq.s32.totalorder %s18, 0
      %p106 = por %p104, %p105
      %p107 = scmp.ne.s32.totalorder %s99, %s101
      %p108 = scmp.eq.s32.totalorder %s23, 1
      %p109 = por %p107, %p108
      %p110 = scmp.ne.s32.totalorder %s101, %s102
      %p111 = scmp.eq.s32.totalorder %s23, 0
      %p112 = por %p110, %p111
      %p113 = scmp.ne.s32.totalorder %s101, %s102
      %p114 = scmp.eq.s32.totalorder %s24, 1
      %p115 = por %p113, %p114
      %p117 = scmp.ne.s32.totalorder %s102, %s116
      %p118 = scmp.eq.s32.totalorder %s24, 0
      %p119 = por %p117, %p118
      %s121 = sadd.s32 %s120, 1
      %p124 = scmp.eq.s32.totalorder %s18, 1
      %p125 = scmp.ne.s32.totalorder %s120, %s122
      %p126 = scmp.eq.s32.totalorder %s18, 0
      %p127 = por %p125, %p126
      %p128 = scmp.ne.s32.totalorder %s120, %s122
      %p129 = scmp.eq.s32.totalorder %s23, 1
      %p130 = por %p128, %p129
      %p131 = scmp.ne.s32.totalorder %s122, %s123
      %p132 = scmp.eq.s32.totalorder %s23, 0
      %p133 = por %p131, %p132
      %p134 = scmp.ne.s32.totalorder %s122, %s123
      %p135 = scmp.eq.s32.totalorder %s24, 1
      %p136 = por %p134, %p135
      %p138 = scmp.ne.s32.totalorder %s123, %s137
      %p139 = scmp.eq.s32.totalorder %s24, 0
      %p140 = por %p138, %p139
      %s142 = sadd.s32 %s141, 1
      %p145 = scmp.eq.s32.totalorder %s18, 1
      %p146 = scmp.ne.s32.totalorder %s141, %s143
      %p147 = scmp.eq.s32.totalorder %s18, 0
      %p148 = por %p146, %p147
      %p149 = scmp.ne.s32.totalorder %s141, %s143
      %p150 = scmp.eq.s32.totalorder %s23, 1
      %p151 = por %p149, %p150
      %p152 = scmp.ne.s32.totalorder %s143, %s144
      %p153 = scmp.eq.s32.totalorder %s23, 0
      %p154 = por %p152, %p153
      %p155 = scmp.ne.s32.totalorder %s143, %s144
      %p156 = scmp.eq.s32.totalorder %s24, 1
      %p157 = por %p155, %p156
      %p159 = scmp.ne.s32.totalorder %s144, %s158
      %p160 = scmp.eq.s32.totalorder %s24, 0
      %p161 = por %p159, %p160
      %s163 = sadd.s32 %s162, 1
      %p166 = scmp.eq.s32.totalorder %s18, 1
      %p167 = scmp.ne.s32.totalorder %s162, %s164
      %p168 = scmp.eq.s32.totalorder %s18, 0
      %p169 = por %p167, %p168
      %p170 = scmp.ne.s32.totalorder %s162, %s164
      %p171 = scmp.eq.s32.totalorder %s23, 1
      %p172 = por %p170, %p171
      %p173 = scmp.ne.s32.totalorder %s164, %s165
      %p174 = scmp.eq.s32.totalorder %s23, 0
      %p175 = por %p173, %p174
      %p176 = scmp.ne.s32.totalorder %s164, %s165
      %p177 = scmp.eq.s32.totalorder %s24, 1
      %p178 = por %p176, %p177
      %p180 = scmp.ne.s32.totalorder %s165, %s179
      %p181 = scmp.eq.s32.totalorder %s24, 0
      %p182 = por %p180, %p181
      %s184 = sadd.s32 %s183, 1
      %p187 = scmp.eq.s32.totalorder %s18, 1
      %p188 = scmp.ne.s32.totalorder %s183, %s185
      %p189 = scmp.eq.s32.totalorder %s18, 0
      %p190 = por %p188, %p189
      %p191 = scmp.ne.s32.totalorder %s183, %s185
      %p192 = scmp.eq.s32.totalorder %s23, 1
      %p193 = por %p191, %p192
      %p194 = scmp.ne.s32.totalorder %s185, %s186
      %p195 = scmp.eq.s32.totalorder %s23, 0
      %p196 = por %p194, %p195
      %p197 = scmp.ne.s32.totalorder %s185, %s186
      %p198 = scmp.eq.s32.totalorder %s24, 1
      %p199 = por %p197, %p198
      %p201 = scmp.ne.s32.totalorder %s186, %s200
      %p202 = scmp.eq.s32.totalorder %s24, 0
      %p203 = por %p201, %p202
      %s205 = sadd.s32 %s204, 1
      %p208 = scmp.eq.s32.totalorder %s18, 1
      %p209 = scmp.ne.s32.totalorder %s204, %s206
      %p210 = scmp.eq.s32.totalorder %s18, 0
      %p211 = por %p209, %p210
      %p212 = scmp.ne.s32.totalorder %s204, %s206
      %p213 = scmp.eq.s32.totalorder %s23, 1
      %p214 = por %p212, %p213
      %p215 = scmp.ne.s32.totalorder %s206, %s207
      %p216 = scmp.eq.s32.totalorder %s23, 0
      %p217 = por %p215, %p216
      %p218 = scmp.ne.s32.totalorder %s206, %s207
      %p219 = scmp.eq.s32.totalorder %s24, 1
      %p220 = por %p218, %p219
      %p222 = scmp.ne.s32.totalorder %s207, %s221
      %p223 = scmp.eq.s32.totalorder %s24, 0
      %p224 = por %p222, %p223
      %s225 = ssub.s32 %s18, %s25
      %p226 = scmp.eq.s32.totalorder %s225, 0
      %s228 = sadd.s32 %s227, 1
      %s229 = scalar_select %p226, %s227, %s228
      %p232 = pneg %p226
      %p233 = scmp.eq.s32.totalorder %s18, 1
      %p234 = por %p232, %p233
      %p235 = scmp.ne.s32.totalorder %s227, %s230
      %p236 = scmp.eq.s32.totalorder %s18, 0
      %p237 = por %p235, %p236
      %p238 = scmp.ne.s32.totalorder %s227, %s230
      %p239 = scmp.eq.s32.totalorder %s23, 1
      %p240 = por %p238, %p239
      %p241 = scmp.ne.s32.totalorder %s230, %s231
      %p242 = scmp.eq.s32.totalorder %s23, 0
      %p243 = por %p241, %p242
      %p244 = scmp.ne.s32.totalorder %s230, %s231
      %p245 = scmp.eq.s32.totalorder %s24, 1
      %p246 = por %p244, %p245
      %p248 = scmp.ne.s32.totalorder %s231, %s247
      %p249 = scmp.eq.s32.totalorder %s24, 0
      %p250 = por %p248, %p249
      %p251 = scmp.le.s32.totalorder 1, %s18
      %p252 = scmp.lt.s32.totalorder %s18, 3
      %p253 = pnand %p251, %p252
      %p254 = pneg %p253
      // Predicated region
      $region9: #{tpu_custom_call.1} parent=5 // pred_check
        _
      $region10: #{tpu_custom_call.1} parent=5 // pred_check_branch
        %256 = sbr.rel (%p253) target = $region12
      $region11: #{tpu_custom_call.1} parent=5 // pred_region
        %s257 = ssub.s32 %s18, 1
        // Predicated region
        $region13: #{tpu_custom_call.1} parent=11 // pred_check
          %p258 = pneg %p91
        $region14: #{tpu_custom_call.1} parent=11 // pred_check_branch
          %260 = sbr.rel (%p258) target = $region16
        $region15: #{tpu_custom_call.1} parent=11 // pred_region
          _
        $region16: #{tpu_custom_call.1} parent=11 // pred_fallthru
          _
        // Predicated region
        $region17: #{tpu_custom_call.1} parent=11 // pred_check
          %p261 = pneg %p112
        $region18: #{tpu_custom_call.1} parent=11 // pred_check_branch
          %263 = sbr.rel (%p261) target = $region20
        $region19: #{tpu_custom_call.1} parent=11 // pred_region
          _
        $region20: #{tpu_custom_call.1} parent=11 // pred_fallthru
          _
        // Predicated region
        $region21: #{tpu_custom_call.1} parent=11 // pred_check
          %p264 = pneg %p133
        $region22: #{tpu_custom_call.1} parent=11 // pred_check_branch
          %266 = sbr.rel (%p264) target = $region24
        $region23: #{tpu_custom_call.1} parent=11 // pred_region
          _
        $region24: #{tpu_custom_call.1} parent=11 // pred_fallthru
          _
        // Predicated region
        $region25: #{tpu_custom_call.1} parent=11 // pred_check
          %p267 = pneg %p154
        $region26: #{tpu_custom_call.1} parent=11 // pred_check_branch
          %269 = sbr.rel (%p267) target = $region28
        $region27: #{tpu_custom_call.1} parent=11 // pred_region
          _
        $region28: #{tpu_custom_call.1} parent=11 // pred_fallthru
          _
        // Predicated region
        $region29: #{tpu_custom_call.1} parent=11 // pred_check
          %p270 = pneg %p175
        $region30: #{tpu_custom_call.1} parent=11 // pred_check_branch
          %272 = sbr.rel (%p270) target = $region32
        $region31: #{tpu_custom_call.1} parent=11 // pred_region
          _
        $region32: #{tpu_custom_call.1} parent=11 // pred_fallthru
          _
        // Predicated region
        $region33: #{tpu_custom_call.1} parent=11 // pred_check
          %p273 = pneg %p196
        $region34: #{tpu_custom_call.1} parent=11 // pred_check_branch
          %275 = sbr.rel (%p273) target = $region36
        $region35: #{tpu_custom_call.1} parent=11 // pred_region
          _
        $region36: #{tpu_custom_call.1} parent=11 // pred_fallthru
          _
        // Predicated region
        $region37: #{tpu_custom_call.1} parent=11 // pred_check
          %p276 = pneg %p217
        $region38: #{tpu_custom_call.1} parent=11 // pred_check_branch
          %278 = sbr.rel (%p276) target = $region40
        $region39: #{tpu_custom_call.1} parent=11 // pred_region
          _
        $region40: #{tpu_custom_call.1} parent=11 // pred_fallthru
          _
      $region12: #{tpu_custom_call.1} parent=5 // pred_fallthru
        _
      %p279 = scmp.lt.s32.totalorder %s18, 2
      // Predicated region
      $region41: #{tpu_custom_call.1} parent=5 // pred_check
        %p280 = pneg %p279
      $region42: #{tpu_custom_call.1} parent=5 // pred_check_branch
        %282 = sbr.rel (%p280) target = $region44
      $region43: #{tpu_custom_call.1} parent=5 // pred_region
        // Predicated region
        $region45: #{tpu_custom_call.1} parent=43 // pred_check
          %p283 = pneg %p38
        $region46: #{tpu_custom_call.1} parent=43 // pred_check_branch
          %285 = sbr.rel (%p283) target = $region48
        $region47: #{tpu_custom_call.1} parent=43 // pred_region
          %s286 = smul.u32 32, %s18
          %p287 = scmp.lt.s32.totalorder %s286, 63
          %s288 = scalar_select %p287, %s286, 63
          %s289 = smul.addr %s288, 4
          %s290 = scalar_lea.vmem %s0, %s289
          %s291 = smul.u32 32, %s18
        $region48: #{tpu_custom_call.1} parent=43 // pred_fallthru
          _
        // Predicated region
        $region49: #{tpu_custom_call.1} parent=43 // pred_check
          %p292 = pneg %p64
        $region50: #{tpu_custom_call.1} parent=43 // pred_check_branch
          %294 = sbr.rel (%p292) target = $region52
        $region51: #{tpu_custom_call.1} parent=43 // pred_region
          %s295 = smul.u32 32, %s18
          %p296 = scmp.lt.s32.totalorder %s295, 63
          %s297 = scalar_select %p296, %s295, 63
          %s298 = smul.addr %s297, 4
          %s299 = scalar_lea.vmem %s1, %s298
          %s300 = smul.u32 32, %s18
        $region52: #{tpu_custom_call.1} parent=43 // pred_fallthru
          _
      $region44: #{tpu_custom_call.1} parent=5 // pred_fallthru
        _
      %p301 = scmp.le.s32.totalorder 1, %s18
      %p302 = scmp.lt.s32.totalorder %s18, 3
      %p303 = pnand %p301, %p302
      %p304 = pneg %p303
      // Predicated region
      $region53: #{tpu_custom_call.1} parent=5 // pred_check
        _
      $region54: #{tpu_custom_call.1} parent=5 // pred_check_branch
        %306 = sbr.rel (%p303) target = $region56
      $region55: #{tpu_custom_call.1} parent=5 // pred_region
        %s307 = ssub.s32 %s18, 1
        %s308 = smul.u32 32, %s23
        %p309 = scmp.lt.s32.totalorder %s308, 63
        %s310 = scalar_select %p309, %s308, 63
        %s311 = smul.addr %s310, 4
        %s312 = scalar_lea.vmem %s0, %s311
        %p313 = pneg %p44
        %p314 = pneg %p41
        %s315 = smul.u32 32, %s23
        %p316 = scmp.lt.s32.totalorder %s315, 63
        %s317 = scalar_select %p316, %s315, 63
        %s318 = smul.addr %s317, 4
        %s319 = scalar_lea.vmem %s1, %s318
        %p320 = pneg %p70
        %p321 = pneg %p67
        %p322 = pneg %p91
        %p323 = pneg %p88
        %p324 = pneg %p112
        %p325 = pneg %p109
        %p326 = pneg %p133
        %p327 = pneg %p130
        %p328 = pneg %p154
        %p329 = pneg %p151
        %p330 = pneg %p175
        %p331 = pneg %p172
        %p332 = pneg %p196
        %p333 = pneg %p193
        %p334 = pneg %p217
        %p335 = pneg %p214
        %p336 = pneg %p243
        %p337 = pneg %p240
        %s338 = sand.u32 %s230, 1
        %s339 = scalar_lea.sflag [#allocation3], %s338
        %s340 = sand.u32 %s230, 1
        %s341 = smul.addr %s340, 256
        %s342 = scalar_lea.vmem [#allocation2], %s341
        %s343 = smul.u32 32, %s23
        %p344 = scmp.lt.s32.totalorder %s343, 63
        %s345 = scalar_select %p344, %s343, 63
        %s346 = smul.addr %s345, 4
        %s347 = scalar_lea.vmem %s0, %s346
        %s348 = smul.u32 32, %s23
        %s349 = smul.u32 32, %s23
        %p350 = scmp.lt.s32.totalorder %s349, 63
        %s351 = scalar_select %p350, %s349, 63
        %s352 = smul.addr %s351, 4
        %s353 = scalar_lea.vmem %s1, %s352
        %s354 = smul.u32 32, %s23
        %s355 = smul.u32 32, %s23
        %v357 = vld [vmem:[%s347] sm:$0xf]
        %v358 = vld [vmem:[%s347 + $0x4] sm:$0xf]
        %v359 = vld [vmem:[%s347 + $0x8] sm:$0xf]
        %v360 = vld [vmem:[%s347 + $0xc] sm:$0xf]
        %v361 = vld [vmem:[%s347 + $0x10] sm:$0xf]
        %v362 = vld [vmem:[%s347 + $0x14] sm:$0xf]
        %v363 = vld [vmem:[%s347 + $0x18] sm:$0xf]
        %v364 = vld [vmem:[%s347 + $0x1c] sm:$0xf]
        %v365 = vld [vmem:[%s347 + $0x20] sm:$0xf]
        %v366 = vld [vmem:[%s347 + $0x24] sm:$0xf]
        %v367 = vld [vmem:[%s347 + $0x28] sm:$0xf]
        %v368 = vld [vmem:[%s347 + $0x2c] sm:$0xf]
        %v369 = vld [vmem:[%s347 + $0x30] sm:$0xf]
        %v370 = vld [vmem:[%s347 + $0x34] sm:$0xf]
        %v371 = vld [vmem:[%s347 + $0x38] sm:$0xf]
        %v372 = vld [vmem:[%s347 + $0x3c] sm:$0xf]
        %v373 = vld [vmem:[%s347 + $0x40] sm:$0xf]
        %v374 = vld [vmem:[%s347 + $0x44] sm:$0xf]
        %v375 = vld [vmem:[%s347 + $0x48] sm:$0xf]
        %v376 = vld [vmem:[%s347 + $0x4c] sm:$0xf]
        %v377 = vld [vmem:[%s347 + $0x50] sm:$0xf]
        %v378 = vld [vmem:[%s347 + $0x54] sm:$0xf]
        %v379 = vld [vmem:[%s347 + $0x58] sm:$0xf]
        %v380 = vld [vmem:[%s347 + $0x5c] sm:$0xf]
        %v381 = vld [vmem:[%s347 + $0x60] sm:$0xf]
        %v382 = vld [vmem:[%s347 + $0x64] sm:$0xf]
        %v383 = vld [vmem:[%s347 + $0x68] sm:$0xf]
        %v384 = vld [vmem:[%s347 + $0x6c] sm:$0xf]
        %v385 = vld [vmem:[%s347 + $0x70] sm:$0xf]
        %v386 = vld [vmem:[%s347 + $0x74] sm:$0xf]
        %v387 = vld [vmem:[%s347 + $0x78] sm:$0xf]
        %v388 = vld [vmem:[%s347 + $0x7c] sm:$0xf]
        %v389 = vld [vmem:[%s2] sm:$0xf]
        %v390 = vld [vmem:[%s2 + $0x4] sm:$0xf]
        %v391 = vld [vmem:[%s353] sm:$0xf]
        %v392 = vld [vmem:[%s353 + $0x4] sm:$0xf]
        %v393 = vld [vmem:[%s353 + $0x8] sm:$0xf]
        %v394 = vld [vmem:[%s353 + $0xc] sm:$0xf]
        %v395 = vld [vmem:[%s353 + $0x10] sm:$0xf]
        %v396 = vld [vmem:[%s353 + $0x14] sm:$0xf]
        %v397 = vld [vmem:[%s353 + $0x18] sm:$0xf]
        %v398 = vld [vmem:[%s353 + $0x1c] sm:$0xf]
        %v399 = vld [vmem:[%s353 + $0x20] sm:$0xf]
        %v400 = vld [vmem:[%s353 + $0x24] sm:$0xf]
        %v401 = vld [vmem:[%s353 + $0x28] sm:$0xf]
        %v402 = vld [vmem:[%s353 + $0x2c] sm:$0xf]
        %v403 = vld [vmem:[%s353 + $0x30] sm:$0xf]
        %v404 = vld [vmem:[%s353 + $0x34] sm:$0xf]
        %v405 = vld [vmem:[%s353 + $0x38] sm:$0xf]
        %v406 = vld [vmem:[%s353 + $0x3c] sm:$0xf]
        %v407 = vld [vmem:[%s353 + $0x40] sm:$0xf]
        %v408 = vld [vmem:[%s353 + $0x44] sm:$0xf]
        %v409 = vld [vmem:[%s353 + $0x48] sm:$0xf]
        %v410 = vld [vmem:[%s353 + $0x4c] sm:$0xf]
        %v411 = vld [vmem:[%s353 + $0x50] sm:$0xf]
        %v412 = vld [vmem:[%s353 + $0x54] sm:$0xf]
        %v413 = vld [vmem:[%s353 + $0x58] sm:$0xf]
        %v414 = vld [vmem:[%s353 + $0x5c] sm:$0xf]
        %v415 = vld [vmem:[%s353 + $0x60] sm:$0xf]
        %v416 = vld [vmem:[%s353 + $0x64] sm:$0xf]
        %v417 = vld [vmem:[%s353 + $0x68] sm:$0xf]
        %v418 = vld [vmem:[%s353 + $0x6c] sm:$0xf]
        %v419 = vld [vmem:[%s353 + $0x70] sm:$0xf]
        %v420 = vld [vmem:[%s353 + $0x74] sm:$0xf]
        %v421 = vld [vmem:[%s353 + $0x78] sm:$0xf]
        %v422 = vld [vmem:[%s353 + $0x7c] sm:$0xf]
        %v423 = vld [vmem:[%s3] sm:$0xf]
        %v424 = vld [vmem:[%s3 + $0x4] sm:$0xf]
        %v457 = vunpack.c.l.b16 %v391
        %v458 = vunpack.c.l.b16 %v392
        %v459 = vunpack.c.l.b16 %v393
        %v460 = vunpack.c.l.b16 %v394
        %v461 = vunpack.c.l.b16 %v395
        %v462 = vunpack.c.l.b16 %v396
        %v463 = vunpack.c.l.b16 %v397
        %v464 = vunpack.c.l.b16 %v398
        %v465 = vunpack.c.l.b16 %v399
        %v466 = vunpack.c.l.b16 %v400
        %v467 = vunpack.c.l.b16 %v401
        %v468 = vunpack.c.l.b16 %v402
        %v469 = vunpack.c.l.b16 %v403
        %v470 = vunpack.c.l.b16 %v404
        %v471 = vunpack.c.l.b16 %v405
        %v472 = vunpack.c.l.b16 %v406
        %v473 = vunpack.c.l.b16 %v407
        %v474 = vunpack.c.l.b16 %v408
        %v475 = vunpack.c.l.b16 %v409
        %v476 = vunpack.c.l.b16 %v410
        %v477 = vunpack.c.l.b16 %v411
        %v478 = vunpack.c.l.b16 %v412
        %v479 = vunpack.c.l.b16 %v413
        %v480 = vunpack.c.l.b16 %v414
        %v481 = vunpack.c.l.b16 %v415
        %v482 = vunpack.c.l.b16 %v416
        %v483 = vunpack.c.l.b16 %v417
        %v484 = vunpack.c.l.b16 %v418
        %v485 = vunpack.c.l.b16 %v419
        %v486 = vunpack.c.l.b16 %v420
        %v487 = vunpack.c.l.b16 %v421
        %v488 = vunpack.c.l.b16 %v422
        %v489 = vpack.c.b16 %v458, %v457
        %v490 = vpack.c.b16 %v460, %v459
        %v491 = vpack.c.b16 %v462, %v461
        %v492 = vpack.c.b16 %v464, %v463
        %v493 = vpack.c.b16 %v466, %v465
        %v494 = vpack.c.b16 %v468, %v467
        %v495 = vpack.c.b16 %v470, %v469
        %v496 = vpack.c.b16 %v472, %v471
        %v497 = vpack.c.b16 %v474, %v473
        %v498 = vpack.c.b16 %v476, %v475
        %v499 = vpack.c.b16 %v478, %v477
        %v500 = vpack.c.b16 %v480, %v479
        %v501 = vpack.c.b16 %v482, %v481
        %v502 = vpack.c.b16 %v484, %v483
        %v503 = vpack.c.b16 %v486, %v485
        %v504 = vpack.c.b16 %v488, %v487
        %v507 = vunpack.c.l.b16 %v423
        %v508 = vunpack.c.l.b16 %v424
        %v509 = vpack.c.b16 %v508, %v507
        %vm511 = vcmask 130048
        %v513 = vsel %vm511, %v489, 0
        %v516 = vsel %vm511, %v490, 0
        %v519 = vsel %vm511, %v491, 0
        %v522 = vsel %vm511, %v492, 0
        %v525 = vsel %vm511, %v493, 0
        %v528 = vsel %vm511, %v494, 0
        %v531 = vsel %vm511, %v495, 0
        %v534 = vsel %vm511, %v496, 0
        %v537 = vsel %vm511, %v497, 0
        %v540 = vsel %vm511, %v498, 0
        %v543 = vsel %vm511, %v499, 0
        %v546 = vsel %vm511, %v500, 0
        %v549 = vsel %vm511, %v501, 0
        %v552 = vsel %vm511, %v502, 0
        %v555 = vsel %vm511, %v503, 0
        %v558 = vsel %vm511, %v504, 0
        %560 = vmatprep.subr.bf16.mxu0 0
        %561 = vmatpush1.bf16.msra.mxu0 %v509
        %562 = vmatprep.subr.bf16.mxu0 0
        %563 = vmatpush1.bf16.msra.mxu0 0
        %564 = vmatprep.subr.bf16.mxu0 0
        %565 = vmatpush1.bf16.msra.mxu0 0
        %566 = vmatprep.subr.bf16.mxu0 0
        %567 = vmatpush1.bf16.msra.mxu0 0
        %568 = vmatprep.subr.bf16.mxu0 0
        %569 = vmatpush1.bf16.msra.mxu0 0
        %570 = vmatprep.subr.bf16.mxu0 0
        %571 = vmatpush1.bf16.msra.mxu0 0
        %572 = vmatprep.subr.bf16.mxu0 0
        %573 = vmatpush1.bf16.msra.mxu0 0
        %574 = vmatprep.subr.bf16.mxu0 0
        %575 = vmatpush1.bf16.msra.mxu0 0
        %576 = vmatprep.subr.bf16.mxu0 0
        %577 = vmatpush1.bf16.msra.mxu0 0
        %578 = vmatprep.subr.bf16.mxu0 0
        %579 = vmatpush1.bf16.msra.mxu0 0
        %580 = vmatprep.subr.bf16.mxu0 0
        %581 = vmatpush1.bf16.msra.mxu0 0
        %582 = vmatprep.subr.bf16.mxu0 0
        %583 = vmatpush1.bf16.msra.mxu0 0
        %584 = vmatprep.subr.bf16.mxu0 0
        %585 = vmatpush1.bf16.msra.mxu0 0
        %586 = vmatprep.subr.bf16.mxu0 0
        %587 = vmatpush1.bf16.msra.mxu0 0
        %588 = vmatprep.subr.bf16.mxu0 0
        %589 = vmatpush1.bf16.msra.mxu0 0
        %590 = vmatprep.subr.bf16.mxu0 0
        %591 = vmatpush1.bf16.msra.mxu0 0
        %592 = vmatprep.mubr.bf16.mxu0 0
        %593 = vmatmul.mubr.bf16.gmra.mrb[0].mxu0 %v513
        %v594 = vpop.f32.mrb[0].mxu0
        %v595 = vadd.f32 0.0, %v594
        %v596 = vpop.f32.mrb[0].mxu0
        %v597 = vpop.f32.mrb[0].mxu0
        %v598 = vadd.f32 0.0, %v597
        %v599 = vpop.f32.mrb[0].mxu0
        %600 = vmatprep.mubr.bf16.mxu0 0
        %601 = vmatmul.mubr.bf16.gmra.mrb[0].mxu0 %v516
        %v602 = vpop.f32.mrb[0].mxu0
        %v603 = vadd.f32 0.0, %v602
        %v604 = vpop.f32.mrb[0].mxu0
        %v605 = vpop.f32.mrb[0].mxu0
        %v606 = vadd.f32 0.0, %v605
        %v607 = vpop.f32.mrb[0].mxu0
        %608 = vmatprep.mubr.bf16.mxu0 0
        %609 = vmatmul.mubr.bf16.gmra.mrb[0].mxu0 %v519
        %v610 = vpop.f32.mrb[0].mxu0
        %v611 = vadd.f32 0.0, %v610
        %v612 = vpop.f32.mrb[0].mxu0
        %v613 = vpop.f32.mrb[0].mxu0
        %v614 = vadd.f32 0.0, %v613
        %v615 = vpop.f32.mrb[0].mxu0
        %616 = vmatprep.mubr.bf16.mxu0 0
        %617 = vmatmul.mubr.bf16.gmra.mrb[0].mxu0 %v522
        %v618 = vpop.f32.mrb[0].mxu0
        %v619 = vadd.f32 0.0, %v618
        %v620 = vpop.f32.mrb[0].mxu0
        %v621 = vpop.f32.mrb[0].mxu0
        %v622 = vadd.f32 0.0, %v621
        %v623 = vpop.f32.mrb[0].mxu0
        %624 = vmatprep.mubr.bf16.mxu0 0
        %625 = vmatmul.mubr.bf16.gmra.mrb[0].mxu0 %v525
        %v626 = vpop.f32.mrb[0].mxu0
        %v627 = vadd.f32 0.0, %v626
        %v628 = vpop.f32.mrb[0].mxu0
        %v629 = vpop.f32.mrb[0].mxu0
        %v630 = vadd.f32 0.0, %v629
        %v631 = vpop.f32.mrb[0].mxu0
        %632 = vmatprep.mubr.bf16.mxu0 0
        %633 = vmatmul.mubr.bf16.gmra.mrb[0].mxu0 %v528
        %v634 = vpop.f32.mrb[0].mxu0
        %v635 = vadd.f32 0.0, %v634
        %v636 = vpop.f32.mrb[0].mxu0
        %v637 = vpop.f32.mrb[0].mxu0
        %v638 = vadd.f32 0.0, %v637
        %v639 = vpop.f32.mrb[0].mxu0
        %640 = vmatprep.mubr.bf16.mxu0 0
        %641 = vmatmul.mubr.bf16.gmra.mrb[0].mxu0 %v531
        %v642 = vpop.f32.mrb[0].mxu0
        %v643 = vadd.f32 0.0, %v642
        %v644 = vpop.f32.mrb[0].mxu0
        %v645 = vpop.f32.mrb[0].mxu0
        %v646 = vadd.f32 0.0, %v645
        %v647 = vpop.f32.mrb[0].mxu0
        %648 = vmatprep.mubr.bf16.mxu0 0
        %649 = vmatmul.mubr.bf16.gmra.mrb[0].mxu0 %v534
        %v650 = vpop.f32.mrb[0].mxu0
        %v651 = vadd.f32 0.0, %v650
        %v652 = vpop.f32.mrb[0].mxu0
        %v653 = vpop.f32.mrb[0].mxu0
        %v654 = vadd.f32 0.0, %v653
        %v655 = vpop.f32.mrb[0].mxu0
        %656 = vmatprep.mubr.bf16.mxu0 0
        %657 = vmatmul.mubr.bf16.gmra.mrb[0].mxu0 %v537
        %v658 = vpop.f32.mrb[0].mxu0
        %v659 = vadd.f32 0.0, %v658
        %v660 = vpop.f32.mrb[0].mxu0
        %v661 = vpop.f32.mrb[0].mxu0
        %v662 = vadd.f32 0.0, %v661
        %v663 = vpop.f32.mrb[0].mxu0
        %664 = vmatprep.mubr.bf16.mxu0 0
        %665 = vmatmul.mubr.bf16.gmra.mrb[0].mxu0 %v540
        %v666 = vpop.f32.mrb[0].mxu0
        %v667 = vadd.f32 0.0, %v666
        %v668 = vpop.f32.mrb[0].mxu0
        %v669 = vpop.f32.mrb[0].mxu0
        %v670 = vadd.f32 0.0, %v669
        %v671 = vpop.f32.mrb[0].mxu0
        %672 = vmatprep.mubr.bf16.mxu0 0
        %673 = vmatmul.mubr.bf16.gmra.mrb[0].mxu0 %v543
        %v674 = vpop.f32.mrb[0].mxu0
        %v675 = vadd.f32 0.0, %v674
        %v676 = vpop.f32.mrb[0].mxu0
        %v677 = vpop.f32.mrb[0].mxu0
        %v678 = vadd.f32 0.0, %v677
        %v679 = vpop.f32.mrb[0].mxu0
        %680 = vmatprep.mubr.bf16.mxu0 0
        %681 = vmatmul.mubr.bf16.gmra.mrb[0].mxu0 %v546
        %v682 = vpop.f32.mrb[0].mxu0
        %v683 = vadd.f32 0.0, %v682
        %v684 = vpop.f32.mrb[0].mxu0
        %v685 = vpop.f32.mrb[0].mxu0
        %v686 = vadd.f32 0.0, %v685
        %v687 = vpop.f32.mrb[0].mxu0
        %688 = vmatprep.mubr.bf16.mxu0 0
        %689 = vmatmul.mubr.bf16.gmra.mrb[0].mxu0 %v549
        %v690 = vpop.f32.mrb[0].mxu0
        %v691 = vadd.f32 0.0, %v690
        %v692 = vpop.f32.mrb[0].mxu0
        %v693 = vpop.f32.mrb[0].mxu0
        %v694 = vadd.f32 0.0, %v693
        %v695 = vpop.f32.mrb[0].mxu0
        %696 = vmatprep.mubr.bf16.mxu0 0
        %697 = vmatmul.mubr.bf16.gmra.mrb[0].mxu0 %v552
        %v698 = vpop.f32.mrb[0].mxu0
        %v699 = vadd.f32 0.0, %v698
        %v700 = vpop.f32.mrb[0].mxu0
        %v701 = vpop.f32.mrb[0].mxu0
        %v702 = vadd.f32 0.0, %v701
        %v703 = vpop.f32.mrb[0].mxu0
        %704 = vmatprep.mubr.bf16.mxu0 0
        %705 = vmatmul.mubr.bf16.gmra.mrb[0].mxu0 %v555
        %v706 = vpop.f32.mrb[0].mxu0
        %v707 = vadd.f32 0.0, %v706
        %v708 = vpop.f32.mrb[0].mxu0
        %v709 = vpop.f32.mrb[0].mxu0
        %v710 = vadd.f32 0.0, %v709
        %v711 = vpop.f32.mrb[0].mxu0
        %712 = vmatprep.mubr.bf16.mxu0 0
        %713 = vmatmul.mubr.bf16.gmra.mrb[0].mxu0 %v558
        %v714 = vpop.f32.mrb[0].mxu0
        %v715 = vadd.f32 0.0, %v714
        %v716 = vpop.f32.mrb[0].mxu0
        %v717 = vpop.f32.mrb[0].mxu0
        %v718 = vadd.f32 0.0, %v717
        %v719 = vpop.f32.mrb[0].mxu0
        %720 = vdwg.mxu0
        %v753 = vunpack.c.l.b16 %v357
        %v754 = vunpack.c.l.b16 %v358
        %v755 = vunpack.c.l.b16 %v359
        %v756 = vunpack.c.l.b16 %v360
        %v757 = vunpack.c.l.b16 %v361
        %v758 = vunpack.c.l.b16 %v362
        %v759 = vunpack.c.l.b16 %v363
        %v760 = vunpack.c.l.b16 %v364
        %v761 = vunpack.c.l.b16 %v365
        %v762 = vunpack.c.l.b16 %v366
        %v763 = vunpack.c.l.b16 %v367
        %v764 = vunpack.c.l.b16 %v368
        %v765 = vunpack.c.l.b16 %v369
        %v766 = vunpack.c.l.b16 %v370
        %v767 = vunpack.c.l.b16 %v371
        %v768 = vunpack.c.l.b16 %v372
        %v769 = vunpack.c.l.b16 %v373
        %v770 = vunpack.c.l.b16 %v374
        %v771 = vunpack.c.l.b16 %v375
        %v772 = vunpack.c.l.b16 %v376
        %v773 = vunpack.c.l.b16 %v377
        %v774 = vunpack.c.l.b16 %v378
        %v775 = vunpack.c.l.b16 %v379
        %v776 = vunpack.c.l.b16 %v380
        %v777 = vunpack.c.l.b16 %v381
        %v778 = vunpack.c.l.b16 %v382
        %v779 = vunpack.c.l.b16 %v383
        %v780 = vunpack.c.l.b16 %v384
        %v781 = vunpack.c.l.b16 %v385
        %v782 = vunpack.c.l.b16 %v386
        %v783 = vunpack.c.l.b16 %v387
        %v784 = vunpack.c.l.b16 %v388
        %v785 = vpack.c.b16 %v754, %v753
        %v786 = vpack.c.b16 %v756, %v755
        %v787 = vpack.c.b16 %v758, %v757
        %v788 = vpack.c.b16 %v760, %v759
        %v789 = vpack.c.b16 %v762, %v761
        %v790 = vpack.c.b16 %v764, %v763
        %v791 = vpack.c.b16 %v766, %v765
        %v792 = vpack.c.b16 %v768, %v767
        %v793 = vpack.c.b16 %v770, %v769
        %v794 = vpack.c.b16 %v772, %v771
        %v795 = vpack.c.b16 %v774, %v773
        %v796 = vpack.c.b16 %v776, %v775
        %v797 = vpack.c.b16 %v778, %v777
        %v798 = vpack.c.b16 %v780, %v779
        %v799 = vpack.c.b16 %v782, %v781
        %v800 = vpack.c.b16 %v784, %v783
        %v803 = vunpack.c.l.b16 %v389
        %v804 = vunpack.c.l.b16 %v390
        %v805 = vpack.c.b16 %v804, %v803
        %v808 = vsel %vm511, %v785, 0
        %v811 = vsel %vm511, %v786, 0
        %v814 = vsel %vm511, %v787, 0
        %v817 = vsel %vm511, %v788, 0
        %v820 = vsel %vm511, %v789, 0
        %v823 = vsel %vm511, %v790, 0
        %v826 = vsel %vm511, %v791, 0
        %v829 = vsel %vm511, %v792, 0
        %v832 = vsel %vm511, %v793, 0
        %v835 = vsel %vm511, %v794, 0
        %v838 = vsel %vm511, %v795, 0
        %v841 = vsel %vm511, %v796, 0
        %v844 = vsel %vm511, %v797, 0
        %v847 = vsel %vm511, %v798, 0
        %v850 = vsel %vm511, %v799, 0
        %v853 = vsel %vm511, %v800, 0
        %855 = vmatprep.subr.bf16.mxu0 0
        %856 = vmatpush1.bf16.msra.mxu0 %v805
        %857 = vmatprep.subr.bf16.mxu0 0
        %858 = vmatpush1.bf16.msra.mxu0 0
        %859 = vmatprep.subr.bf16.mxu0 0
        %860 = vmatpush1.bf16.msra.mxu0 0
        %861 = vmatprep.subr.bf16.mxu0 0
        %862 = vmatpush1.bf16.msra.mxu0 0
        %863 = vmatprep.subr.bf16.mxu0 0
        %864 = vmatpush1.bf16.msra.mxu0 0
        %865 = vmatprep.subr.bf16.mxu0 0
        %866 = vmatpush1.bf16.msra.mxu0 0
        %867 = vmatprep.subr.bf16.mxu0 0
        %868 = vmatpush1.bf16.msra.mxu0 0
        %869 = vmatprep.subr.bf16.mxu0 0
        %870 = vmatpush1.bf16.msra.mxu0 0
        %871 = vmatprep.subr.bf16.mxu0 0
        %872 = vmatpush1.bf16.msra.mxu0 0
        %873 = vmatprep.subr.bf16.mxu0 0
        %874 = vmatpush1.bf16.msra.mxu0 0
        %875 = vmatprep.subr.bf16.mxu0 0
        %876 = vmatpush1.bf16.msra.mxu0 0
        %877 = vmatprep.subr.bf16.mxu0 0
        %878 = vmatpush1.bf16.msra.mxu0 0
        %879 = vmatprep.subr.bf16.mxu0 0
        %880 = vmatpush1.bf16.msra.mxu0 0
        %881 = vmatprep.subr.bf16.mxu0 0
        %882 = vmatpush1.bf16.msra.mxu0 0
        %883 = vmatprep.subr.bf16.mxu0 0
        %884 = vmatpush1.bf16.msra.mxu0 0
        %885 = vmatprep.subr.bf16.mxu0 0
        %886 = vmatpush1.bf16.msra.mxu0 0
        %887 = vmatprep.mubr.bf16.mxu0 0
        %888 = vmatmul.mubr.bf16.gmra.mrb[0].mxu0 %v808
        %v889 = vpop.f32.mrb[0].mxu0
        %v890 = vadd.f32 %v595, %v889
        %v891 = vpop.f32.mrb[0].mxu0
        %v892 = vpop.f32.mrb[0].mxu0
        %v893 = vadd.f32 %v598, %v892
        %v894 = vpop.f32.mrb[0].mxu0
        %895 = vmatprep.mubr.bf16.mxu0 0
        %896 = vmatmul.mubr.bf16.gmra.mrb[0].mxu0 %v811
        %v897 = vpop.f32.mrb[0].mxu0
        %v898 = vadd.f32 %v603, %v897
        %v899 = vpop.f32.mrb[0].mxu0
        %v900 = vpop.f32.mrb[0].mxu0
        %v901 = vadd.f32 %v606, %v900
        %v902 = vpop.f32.mrb[0].mxu0
        %903 = vmatprep.mubr.bf16.mxu0 0
        %904 = vmatmul.mubr.bf16.gmra.mrb[0].mxu0 %v814
        %v905 = vpop.f32.mrb[0].mxu0
        %v906 = vadd.f32 %v611, %v905
        %v907 = vpop.f32.mrb[0].mxu0
        %v908 = vpop.f32.mrb[0].mxu0
        %v909 = vadd.f32 %v614, %v908
        %v910 = vpop.f32.mrb[0].mxu0
        %911 = vmatprep.mubr.bf16.mxu0 0
        %912 = vmatmul.mubr.bf16.gmra.mrb[0].mxu0 %v817
        %v913 = vpop.f32.mrb[0].mxu0
        %v914 = vadd.f32 %v619, %v913
        %v915 = vpop.f32.mrb[0].mxu0
        %v916 = vpop.f32.mrb[0].mxu0
        %v917 = vadd.f32 %v622, %v916
        %v918 = vpop.f32.mrb[0].mxu0
        %919 = vmatprep.mubr.bf16.mxu0 0
        %920 = vmatmul.mubr.bf16.gmra.mrb[0].mxu0 %v820
        %v921 = vpop.f32.mrb[0].mxu0
        %v922 = vadd.f32 %v627, %v921
        %v923 = vpop.f32.mrb[0].mxu0
        %v924 = vpop.f32.mrb[0].mxu0
        %v925 = vadd.f32 %v630, %v924
        %v926 = vpop.f32.mrb[0].mxu0
        %927 = vmatprep.mubr.bf16.mxu0 0
        %928 = vmatmul.mubr.bf16.gmra.mrb[0].mxu0 %v823
        %v929 = vpop.f32.mrb[0].mxu0
        %v930 = vadd.f32 %v635, %v929
        %v931 = vpop.f32.mrb[0].mxu0
        %v932 = vpop.f32.mrb[0].mxu0
        %v933 = vadd.f32 %v638, %v932
        %v934 = vpop.f32.mrb[0].mxu0
        %935 = vmatprep.mubr.bf16.mxu0 0
        %936 = vmatmul.mubr.bf16.gmra.mrb[0].mxu0 %v826
        %v937 = vpop.f32.mrb[0].mxu0
        %v938 = vadd.f32 %v643, %v937
        %v939 = vpop.f32.mrb[0].mxu0
        %v940 = vpop.f32.mrb[0].mxu0
        %v941 = vadd.f32 %v646, %v940
        %v942 = vpop.f32.mrb[0].mxu0
        %943 = vmatprep.mubr.bf16.mxu0 0
        %944 = vmatmul.mubr.bf16.gmra.mrb[0].mxu0 %v829
        %v945 = vpop.f32.mrb[0].mxu0
        %v946 = vadd.f32 %v651, %v945
        %v947 = vpop.f32.mrb[0].mxu0
        %v948 = vpop.f32.mrb[0].mxu0
        %v949 = vadd.f32 %v654, %v948
        %v950 = vpop.f32.mrb[0].mxu0
        %951 = vmatprep.mubr.bf16.mxu0 0
        %952 = vmatmul.mubr.bf16.gmra.mrb[0].mxu0 %v832
        %v953 = vpop.f32.mrb[0].mxu0
        %v954 = vadd.f32 %v659, %v953
        %v955 = vpop.f32.mrb[0].mxu0
        %v956 = vpop.f32.mrb[0].mxu0
        %v957 = vadd.f32 %v662, %v956
        %v958 = vpop.f32.mrb[0].mxu0
        %959 = vmatprep.mubr.bf16.mxu0 0
        %960 = vmatmul.mubr.bf16.gmra.mrb[0].mxu0 %v835
        %v961 = vpop.f32.mrb[0].mxu0
        %v962 = vadd.f32 %v667, %v961
        %v963 = vpop.f32.mrb[0].mxu0
        %v964 = vpop.f32.mrb[0].mxu0
        %v965 = vadd.f32 %v670, %v964
        %v966 = vpop.f32.mrb[0].mxu0
        %967 = vmatprep.mubr.bf16.mxu0 0
        %968 = vmatmul.mubr.bf16.gmra.mrb[0].mxu0 %v838
        %v969 = vpop.f32.mrb[0].mxu0
        %v970 = vadd.f32 %v675, %v969
        %v971 = vpop.f32.mrb[0].mxu0
        %v972 = vpop.f32.mrb[0].mxu0
        %v973 = vadd.f32 %v678, %v972
        %v974 = vpop.f32.mrb[0].mxu0
        %975 = vmatprep.mubr.bf16.mxu0 0
        %976 = vmatmul.mubr.bf16.gmra.mrb[0].mxu0 %v841
        %v977 = vpop.f32.mrb[0].mxu0
        %v978 = vadd.f32 %v683, %v977
        %v979 = vpop.f32.mrb[0].mxu0
        %v980 = vpop.f32.mrb[0].mxu0
        %v981 = vadd.f32 %v686, %v980
        %v982 = vpop.f32.mrb[0].mxu0
        %983 = vmatprep.mubr.bf16.mxu0 0
        %984 = vmatmul.mubr.bf16.gmra.mrb[0].mxu0 %v844
        %v985 = vpop.f32.mrb[0].mxu0
        %v986 = vadd.f32 %v691, %v985
        %v987 = vpop.f32.mrb[0].mxu0
        %v988 = vpop.f32.mrb[0].mxu0
        %v989 = vadd.f32 %v694, %v988
        %v990 = vpop.f32.mrb[0].mxu0
        %991 = vmatprep.mubr.bf16.mxu0 0
        %992 = vmatmul.mubr.bf16.gmra.mrb[0].mxu0 %v847
        %v993 = vpop.f32.mrb[0].mxu0
        %v994 = vadd.f32 %v699, %v993
        %v995 = vpop.f32.mrb[0].mxu0
        %v996 = vpop.f32.mrb[0].mxu0
        %v997 = vadd.f32 %v702, %v996
        %v998 = vpop.f32.mrb[0].mxu0
        %999 = vmatprep.mubr.bf16.mxu0 0
        %1000 = vmatmul.mubr.bf16.gmra.mrb[0].mxu0 %v850
        %v1001 = vpop.f32.mrb[0].mxu0
        %v1002 = vadd.f32 %v707, %v1001
        %v1003 = vpop.f32.mrb[0].mxu0
        %v1004 = vpop.f32.mrb[0].mxu0
        %v1005 = vadd.f32 %v710, %v1004
        %v1006 = vpop.f32.mrb[0].mxu0
        %1007 = vmatprep.mubr.bf16.mxu0 0
        %1008 = vmatmul.mubr.bf16.gmra.mrb[0].mxu0 %v853
        %v1009 = vpop.f32.mrb[0].mxu0
        %v1010 = vadd.f32 %v715, %v1009
        %v1011 = vpop.f32.mrb[0].mxu0
        %v1012 = vpop.f32.mrb[0].mxu0
        %v1013 = vadd.f32 %v718, %v1012
        %v1014 = vpop.f32.mrb[0].mxu0
        %1015 = vdwg.mxu0
        %v1016 = vld [vmem:[%s4] sm:$0x1]
        %v1018 = vlaneseq
        %v1019 = vshrl.u32 %v1018, 7
        %v1020 = vsub.s32 0, %v1019
        %v1021 = vrot.slane %v1016, %v1020
        %v1023 = vadd.f32 %v890, %v1021
        %v1024 = vadd.f32 %v893, %v1021
        %v1025 = vadd.f32 %v898, %v1021
        %v1026 = vadd.f32 %v901, %v1021
        %v1027 = vadd.f32 %v906, %v1021
        %v1028 = vadd.f32 %v909, %v1021
        %v1029 = vadd.f32 %v914, %v1021
        %v1030 = vadd.f32 %v917, %v1021
        %v1031 = vadd.f32 %v922, %v1021
        %v1032 = vadd.f32 %v925, %v1021
        %v1033 = vadd.f32 %v930, %v1021
        %v1034 = vadd.f32 %v933, %v1021
        %v1035 = vadd.f32 %v938, %v1021
        %v1036 = vadd.f32 %v941, %v1021
        %v1037 = vadd.f32 %v946, %v1021
        %v1038 = vadd.f32 %v949, %v1021
        %v1039 = vadd.f32 %v954, %v1021
        %v1040 = vadd.f32 %v957, %v1021
        %v1041 = vadd.f32 %v962, %v1021
        %v1042 = vadd.f32 %v965, %v1021
        %v1043 = vadd.f32 %v970, %v1021
        %v1044 = vadd.f32 %v973, %v1021
        %v1045 = vadd.f32 %v978, %v1021
        %v1046 = vadd.f32 %v981, %v1021
        %v1047 = vadd.f32 %v986, %v1021
        %v1048 = vadd.f32 %v989, %v1021
        %v1049 = vadd.f32 %v994, %v1021
        %v1050 = vadd.f32 %v997, %v1021
        %v1051 = vadd.f32 %v1002, %v1021
        %v1052 = vadd.f32 %v1005, %v1021
        %v1053 = vadd.f32 %v1010, %v1021
        %v1054 = vadd.f32 %v1013, %v1021
        %v1055 = vmax.f32 %v1023, 0.0
        %v1056 = vmax.f32 %v1024, 0.0
        %v1057 = vmax.f32 %v1025, 0.0
        %v1058 = vmax.f32 %v1026, 0.0
        %v1059 = vmax.f32 %v1027, 0.0
        %v1060 = vmax.f32 %v1028, 0.0
        %v1061 = vmax.f32 %v1029, 0.0
        %v1062 = vmax.f32 %v1030, 0.0
        %v1063 = vmax.f32 %v1031, 0.0
        %v1064 = vmax.f32 %v1032, 0.0
        %v1065 = vmax.f32 %v1033, 0.0
        %v1066 = vmax.f32 %v1034, 0.0
        %v1067 = vmax.f32 %v1035, 0.0
        %v1068 = vmax.f32 %v1036, 0.0
        %v1069 = vmax.f32 %v1037, 0.0
        %v1070 = vmax.f32 %v1038, 0.0
        %v1071 = vmax.f32 %v1039, 0.0
        %v1072 = vmax.f32 %v1040, 0.0
        %v1073 = vmax.f32 %v1041, 0.0
        %v1074 = vmax.f32 %v1042, 0.0
        %v1075 = vmax.f32 %v1043, 0.0
        %v1076 = vmax.f32 %v1044, 0.0
        %v1077 = vmax.f32 %v1045, 0.0
        %v1078 = vmax.f32 %v1046, 0.0
        %v1079 = vmax.f32 %v1047, 0.0
        %v1080 = vmax.f32 %v1048, 0.0
        %v1081 = vmax.f32 %v1049, 0.0
        %v1082 = vmax.f32 %v1050, 0.0
        %v1083 = vmax.f32 %v1051, 0.0
        %v1084 = vmax.f32 %v1052, 0.0
        %v1085 = vmax.f32 %v1053, 0.0
        %v1086 = vmax.f32 %v1054, 0.0
        %v1087 = vpack.c.bf16 %v1056, %v1055
        %v1088 = vpack.c.bf16 %v1058, %v1057
        %v1089 = vpack.c.bf16 %v1060, %v1059
        %v1090 = vpack.c.bf16 %v1062, %v1061
        %v1091 = vpack.c.bf16 %v1064, %v1063
        %v1092 = vpack.c.bf16 %v1066, %v1065
        %v1093 = vpack.c.bf16 %v1068, %v1067
        %v1094 = vpack.c.bf16 %v1070, %v1069
        %v1095 = vpack.c.bf16 %v1072, %v1071
        %v1096 = vpack.c.bf16 %v1074, %v1073
        %v1097 = vpack.c.bf16 %v1076, %v1075
        %v1098 = vpack.c.bf16 %v1078, %v1077
        %v1099 = vpack.c.bf16 %v1080, %v1079
        %v1100 = vpack.c.bf16 %v1082, %v1081
        %v1101 = vpack.c.bf16 %v1084, %v1083
        %v1102 = vpack.c.bf16 %v1086, %v1085
        %v1103 = vld [vmem:[%s5] sm:$0xf]
        %v1104 = vld [vmem:[%s5 + $0x4] sm:$0xf]
        %v1105 = vld [vmem:[%s5 + $0x8] sm:$0xf]
        %v1106 = vld [vmem:[%s5 + $0xc] sm:$0xf]
        %v1107 = vld [vmem:[%s5 + $0x10] sm:$0xf]
        %v1108 = vld [vmem:[%s5 + $0x14] sm:$0xf]
        %v1109 = vld [vmem:[%s5 + $0x18] sm:$0xf]
        %v1110 = vld [vmem:[%s5 + $0x1c] sm:$0xf]
        %v1111 = vld [vmem:[%s5 + $0x20] sm:$0xf]
        %v1112 = vld [vmem:[%s5 + $0x24] sm:$0xf]
        %v1113 = vld [vmem:[%s5 + $0x28] sm:$0xf]
        %v1114 = vld [vmem:[%s5 + $0x2c] sm:$0xf]
        %v1115 = vld [vmem:[%s5 + $0x30] sm:$0xf]
        %v1116 = vld [vmem:[%s5 + $0x34] sm:$0xf]
        %v1117 = vld [vmem:[%s5 + $0x38] sm:$0xf]
        %v1118 = vld [vmem:[%s5 + $0x3c] sm:$0xf]
        %v1119 = vld [vmem:[%s6] sm:$0x1]
        %v1121 = vlaneseq
        %v1122 = vshrl.u32 %v1121, 7
        %v1123 = vsub.s32 0, %v1122
        %v1124 = vrot.slane %v1119, %v1123
        %v1142 = vunpack.c.l.b16 %v1103
        %v1143 = vunpack.c.l.b16 %v1104
        %v1144 = vunpack.c.l.b16 %v1105
        %v1145 = vunpack.c.l.b16 %v1106
        %v1146 = vunpack.c.l.b16 %v1107
        %v1147 = vunpack.c.l.b16 %v1108
        %v1148 = vunpack.c.l.b16 %v1109
        %v1149 = vunpack.c.l.b16 %v1110
        %v1150 = vunpack.c.l.b16 %v1111
        %v1151 = vunpack.c.l.b16 %v1112
        %v1152 = vunpack.c.l.b16 %v1113
        %v1153 = vunpack.c.l.b16 %v1114
        %v1154 = vunpack.c.l.b16 %v1115
        %v1155 = vunpack.c.l.b16 %v1116
        %v1156 = vunpack.c.l.b16 %v1117
        %v1157 = vunpack.c.l.b16 %v1118
        %v1158 = vpack.c.b16 %v1143, %v1142
        %v1159 = vpack.c.b16 %v1145, %v1144
        %v1160 = vpack.c.b16 %v1147, %v1146
        %v1161 = vpack.c.b16 %v1149, %v1148
        %v1162 = vpack.c.b16 %v1151, %v1150
        %v1163 = vpack.c.b16 %v1153, %v1152
        %v1164 = vpack.c.b16 %v1155, %v1154
        %v1165 = vpack.c.b16 %v1157, %v1156
        %1174 = vmatprep.subr.bf16.mxu0 0
        %1175 = vmatpush1.bf16.msra.mxu0 %v1158
        %1176 = vmatprep.subr.bf16.mxu0 0
        %1177 = vmatpush1.bf16.msra.mxu0 %v1159
        %1178 = vmatprep.subr.bf16.mxu0 0
        %1179 = vmatpush1.bf16.msra.mxu0 %v1160
        %1180 = vmatprep.subr.bf16.mxu0 0
        %1181 = vmatpush1.bf16.msra.mxu0 %v1161
        %1182 = vmatprep.subr.bf16.mxu0 0
        %1183 = vmatpush1.bf16.msra.mxu0 %v1162
        %1184 = vmatprep.subr.bf16.mxu0 0
        %1185 = vmatpush1.bf16.msra.mxu0 %v1163
        %1186 = vmatprep.subr.bf16.mxu0 0
        %1187 = vmatpush1.bf16.msra.mxu0 %v1164
        %1188 = vmatprep.subr.bf16.mxu0 0
        %1189 = vmatpush1.bf16.msra.mxu0 %v1165
        %1190 = vmatprep.subr.bf16.mxu0 0
        %1191 = vmatpush1.bf16.msra.mxu0 0
        %1192 = vmatprep.subr.bf16.mxu0 0
        %1193 = vmatpush1.bf16.msra.mxu0 0
        %1194 = vmatprep.subr.bf16.mxu0 0
        %1195 = vmatpush1.bf16.msra.mxu0 0
        %1196 = vmatprep.subr.bf16.mxu0 0
        %1197 = vmatpush1.bf16.msra.mxu0 0
        %1198 = vmatprep.subr.bf16.mxu0 0
        %1199 = vmatpush1.bf16.msra.mxu0 0
        %1200 = vmatprep.subr.bf16.mxu0 0
        %1201 = vmatpush1.bf16.msra.mxu0 0
        %1202 = vmatprep.subr.bf16.mxu0 0
        %1203 = vmatpush1.bf16.msra.mxu0 0
        %1204 = vmatprep.subr.bf16.mxu0 0
        %1205 = vmatpush1.bf16.msra.mxu0 0
        %1206 = vmatprep.mubr.bf16.mxu0 0
        %1207 = vmatmul.mubr.bf16.gmra.mrb[0].mxu0 %v1087
        %v1208 = vpop.f32.mrb[0].mxu0
        %v1209 = vadd.f32 %v1124, %v1208
        %v1210 = vpop.f32.mrb[0].mxu0
        %v1211 = vpop.f32.mrb[0].mxu0
        %v1212 = vadd.f32 %v1124, %v1211
        %v1213 = vpop.f32.mrb[0].mxu0
        %1214 = vmatprep.mubr.bf16.mxu0 0
        %1215 = vmatmul.mubr.bf16.gmra.mrb[0].mxu0 %v1088
        %v1216 = vpop.f32.mrb[0].mxu0
        %v1217 = vadd.f32 %v1124, %v1216
        %v1218 = vpop.f32.mrb[0].mxu0
        %v1219 = vpop.f32.mrb[0].mxu0
        %v1220 = vadd.f32 %v1124, %v1219
        %v1221 = vpop.f32.mrb[0].mxu0
        %1222 = vmatprep.mubr.bf16.mxu0 0
        %1223 = vmatmul.mubr.bf16.gmra.mrb[0].mxu0 %v1089
        %v1224 = vpop.f32.mrb[0].mxu0
        %v1225 = vadd.f32 %v1124, %v1224
        %v1226 = vpop.f32.mrb[0].mxu0
        %v1227 = vpop.f32.mrb[0].mxu0
        %v1228 = vadd.f32 %v1124, %v1227
        %v1229 = vpop.f32.mrb[0].mxu0
        %1230 = vmatprep.mubr.bf16.mxu0 0
        %1231 = vmatmul.mubr.bf16.gmra.mrb[0].mxu0 %v1090
        %v1232 = vpop.f32.mrb[0].mxu0
        %v1233 = vadd.f32 %v1124, %v1232
        %v1234 = vpop.f32.mrb[0].mxu0
        %v1235 = vpop.f32.mrb[0].mxu0
        %v1236 = vadd.f32 %v1124, %v1235
        %v1237 = vpop.f32.mrb[0].mxu0
        %1238 = vmatprep.mubr.bf16.mxu0 0
        %1239 = vmatmul.mubr.bf16.gmra.mrb[0].mxu0 %v1091
        %v1240 = vpop.f32.mrb[0].mxu0
        %v1241 = vadd.f32 %v1124, %v1240
        %v1242 = vpop.f32.mrb[0].mxu0
        %v1243 = vpop.f32.mrb[0].mxu0
        %v1244 = vadd.f32 %v1124, %v1243
        %v1245 = vpop.f32.mrb[0].mxu0
        %1246 = vmatprep.mubr.bf16.mxu0 0
        %1247 = vmatmul.mubr.bf16.gmra.mrb[0].mxu0 %v1092
        %v1248 = vpop.f32.mrb[0].mxu0
        %v1249 = vadd.f32 %v1124, %v1248
        %v1250 = vpop.f32.mrb[0].mxu0
        %v1251 = vpop.f32.mrb[0].mxu0
        %v1252 = vadd.f32 %v1124, %v1251
        %v1253 = vpop.f32.mrb[0].mxu0
        %1254 = vmatprep.mubr.bf16.mxu0 0
        %1255 = vmatmul.mubr.bf16.gmra.mrb[0].mxu0 %v1093
        %v1256 = vpop.f32.mrb[0].mxu0
        %v1257 = vadd.f32 %v1124, %v1256
        %v1258 = vpop.f32.mrb[0].mxu0
        %v1259 = vpop.f32.mrb[0].mxu0
        %v1260 = vadd.f32 %v1124, %v1259
        %v1261 = vpop.f32.mrb[0].mxu0
        %1262 = vmatprep.mubr.bf16.mxu0 0
        %1263 = vmatmul.mubr.bf16.gmra.mrb[0].mxu0 %v1094
        %v1264 = vpop.f32.mrb[0].mxu0
        %v1265 = vadd.f32 %v1124, %v1264
        %v1266 = vpop.f32.mrb[0].mxu0
        %v1267 = vpop.f32.mrb[0].mxu0
        %v1268 = vadd.f32 %v1124, %v1267
        %v1269 = vpop.f32.mrb[0].mxu0
        %1270 = vmatprep.mubr.bf16.mxu0 0
        %1271 = vmatmul.mubr.bf16.gmra.mrb[0].mxu0 %v1095
        %v1272 = vpop.f32.mrb[0].mxu0
        %v1273 = vadd.f32 %v1124, %v1272
        %v1274 = vpop.f32.mrb[0].mxu0
        %v1275 = vpop.f32.mrb[0].mxu0
        %v1276 = vadd.f32 %v1124, %v1275
        %v1277 = vpop.f32.mrb[0].mxu0
        %1278 = vmatprep.mubr.bf16.mxu0 0
        %1279 = vmatmul.mubr.bf16.gmra.mrb[0].mxu0 %v1096
        %v1280 = vpop.f32.mrb[0].mxu0
        %v1281 = vadd.f32 %v1124, %v1280
        %v1282 = vpop.f32.mrb[0].mxu0
        %v1283 = vpop.f32.mrb[0].mxu0
        %v1284 = vadd.f32 %v1124, %v1283
        %v1285 = vpop.f32.mrb[0].mxu0
        %1286 = vmatprep.mubr.bf16.mxu0 0
        %1287 = vmatmul.mubr.bf16.gmra.mrb[0].mxu0 %v1097
        %v1288 = vpop.f32.mrb[0].mxu0
        %v1289 = vadd.f32 %v1124, %v1288
        %v1290 = vpop.f32.mrb[0].mxu0
        %v1291 = vpop.f32.mrb[0].mxu0
        %v1292 = vadd.f32 %v1124, %v1291
        %v1293 = vpop.f32.mrb[0].mxu0
        %1294 = vmatprep.mubr.bf16.mxu0 0
        %1295 = vmatmul.mubr.bf16.gmra.mrb[0].mxu0 %v1098
        %v1296 = vpop.f32.mrb[0].mxu0
        %v1297 = vadd.f32 %v1124, %v1296
        %v1298 = vpop.f32.mrb[0].mxu0
        %v1299 = vpop.f32.mrb[0].mxu0
        %v1300 = vadd.f32 %v1124, %v1299
        %v1301 = vpop.f32.mrb[0].mxu0
        %1302 = vmatprep.mubr.bf16.mxu0 0
        %1303 = vmatmul.mubr.bf16.gmra.mrb[0].mxu0 %v1099
        %v1304 = vpop.f32.mrb[0].mxu0
        %v1305 = vadd.f32 %v1124, %v1304
        %v1306 = vpop.f32.mrb[0].mxu0
        %v1307 = vpop.f32.mrb[0].mxu0
        %v1308 = vadd.f32 %v1124, %v1307
        %v1309 = vpop.f32.mrb[0].mxu0
        %1310 = vmatprep.mubr.bf16.mxu0 0
        %1311 = vmatmul.mubr.bf16.gmra.mrb[0].mxu0 %v1100
        %v1312 = vpop.f32.mrb[0].mxu0
        %v1313 = vadd.f32 %v1124, %v1312
        %v1314 = vpop.f32.mrb[0].mxu0
        %v1315 = vpop.f32.mrb[0].mxu0
        %v1316 = vadd.f32 %v1124, %v1315
        %v1317 = vpop.f32.mrb[0].mxu0
        %1318 = vmatprep.mubr.bf16.mxu0 0
        %1319 = vmatmul.mubr.bf16.gmra.mrb[0].mxu0 %v1101
        %v1320 = vpop.f32.mrb[0].mxu0
        %v1321 = vadd.f32 %v1124, %v1320
        %v1322 = vpop.f32.mrb[0].mxu0
        %v1323 = vpop.f32.mrb[0].mxu0
        %v1324 = vadd.f32 %v1124, %v1323
        %v1325 = vpop.f32.mrb[0].mxu0
        %1326 = vmatprep.mubr.bf16.mxu0 0
        %1327 = vmatmul.mubr.bf16.gmra.mrb[0].mxu0 %v1102
        %v1328 = vpop.f32.mrb[0].mxu0
        %v1329 = vadd.f32 %v1124, %v1328
        %v1330 = vpop.f32.mrb[0].mxu0
        %v1331 = vpop.f32.mrb[0].mxu0
        %v1332 = vadd.f32 %v1124, %v1331
        %v1333 = vpop.f32.mrb[0].mxu0
        %1334 = vdwg.mxu0
        %v1335 = vmax.f32 %v1209, 0.0
        %v1336 = vmax.f32 %v1212, 0.0
        %v1337 = vmax.f32 %v1217, 0.0
        %v1338 = vmax.f32 %v1220, 0.0
        %v1339 = vmax.f32 %v1225, 0.0
        %v1340 = vmax.f32 %v1228, 0.0
        %v1341 = vmax.f32 %v1233, 0.0
        %v1342 = vmax.f32 %v1236, 0.0
        %v1343 = vmax.f32 %v1241, 0.0
        %v1344 = vmax.f32 %v1244, 0.0
        %v1345 = vmax.f32 %v1249, 0.0
        %v1346 = vmax.f32 %v1252, 0.0
        %v1347 = vmax.f32 %v1257, 0.0
        %v1348 = vmax.f32 %v1260, 0.0
        %v1349 = vmax.f32 %v1265, 0.0
        %v1350 = vmax.f32 %v1268, 0.0
        %v1351 = vmax.f32 %v1273, 0.0
        %v1352 = vmax.f32 %v1276, 0.0
        %v1353 = vmax.f32 %v1281, 0.0
        %v1354 = vmax.f32 %v1284, 0.0
        %v1355 = vmax.f32 %v1289, 0.0
        %v1356 = vmax.f32 %v1292, 0.0
        %v1357 = vmax.f32 %v1297, 0.0
        %v1358 = vmax.f32 %v1300, 0.0
        %v1359 = vmax.f32 %v1305, 0.0
        %v1360 = vmax.f32 %v1308, 0.0
        %v1361 = vmax.f32 %v1313, 0.0
        %v1362 = vmax.f32 %v1316, 0.0
        %v1363 = vmax.f32 %v1321, 0.0
        %v1364 = vmax.f32 %v1324, 0.0
        %v1365 = vmax.f32 %v1329, 0.0
        %v1366 = vmax.f32 %v1332, 0.0
        %v1367 = vld [vmem:[%s7] sm:$0x1]
        %v1369 = vlaneseq
        %v1370 = vshrl.u32 %v1369, 7
        %v1371 = vsub.s32 0, %v1370
        %v1372 = vrot.slane %v1367, %v1371
        %v1374 = vmul.f32 %v1335, %v1372
        %v1375 = vmul.f32 %v1336, %v1372
        %v1376 = vmul.f32 %v1337, %v1372
        %v1377 = vmul.f32 %v1338, %v1372
        %v1378 = vmul.f32 %v1339, %v1372
        %v1379 = vmul.f32 %v1340, %v1372
        %v1380 = vmul.f32 %v1341, %v1372
        %v1381 = vmul.f32 %v1342, %v1372
        %v1382 = vmul.f32 %v1343, %v1372
        %v1383 = vmul.f32 %v1344, %v1372
        %v1384 = vmul.f32 %v1345, %v1372
        %v1385 = vmul.f32 %v1346, %v1372
        %v1386 = vmul.f32 %v1347, %v1372
        %v1387 = vmul.f32 %v1348, %v1372
        %v1388 = vmul.f32 %v1349, %v1372
        %v1389 = vmul.f32 %v1350, %v1372
        %v1390 = vmul.f32 %v1351, %v1372
        %v1391 = vmul.f32 %v1352, %v1372
        %v1392 = vmul.f32 %v1353, %v1372
        %v1393 = vmul.f32 %v1354, %v1372
        %v1394 = vmul.f32 %v1355, %v1372
        %v1395 = vmul.f32 %v1356, %v1372
        %v1396 = vmul.f32 %v1357, %v1372
        %v1397 = vmul.f32 %v1358, %v1372
        %v1398 = vmul.f32 %v1359, %v1372
        %v1399 = vmul.f32 %v1360, %v1372
        %v1400 = vmul.f32 %v1361, %v1372
        %v1401 = vmul.f32 %v1362, %v1372
        %v1402 = vmul.f32 %v1363, %v1372
        %v1403 = vmul.f32 %v1364, %v1372
        %v1404 = vmul.f32 %v1365, %v1372
        %v1405 = vmul.f32 %v1366, %v1372
        %1406 = vadd.xlane.f32.xlu0 %v1374
        %v1407 = vpop.xlane.xlu0 %1406
        %1408 = vadd.xlane.f32.xlu0 %v1375
        %v1409 = vpop.xlane.xlu0 %1408
        %1410 = vadd.xlane.f32.xlu0 %v1376
        %v1411 = vpop.xlane.xlu0 %1410
        %1412 = vadd.xlane.f32.xlu0 %v1377
        %v1413 = vpop.xlane.xlu0 %1412
        %1414 = vadd.xlane.f32.xlu0 %v1378
        %v1415 = vpop.xlane.xlu0 %1414
        %1416 = vadd.xlane.f32.xlu0 %v1379
        %v1417 = vpop.xlane.xlu0 %1416
        %1418 = vadd.xlane.f32.xlu0 %v1380
        %v1419 = vpop.xlane.xlu0 %1418
        %1420 = vadd.xlane.f32.xlu0 %v1381
        %v1421 = vpop.xlane.xlu0 %1420
        %1422 = vadd.xlane.f32.xlu0 %v1382
        %v1423 = vpop.xlane.xlu0 %1422
        %1424 = vadd.xlane.f32.xlu0 %v1383
        %v1425 = vpop.xlane.xlu0 %1424
        %1426 = vadd.xlane.f32.xlu0 %v1384
        %v1427 = vpop.xlane.xlu0 %1426
        %1428 = vadd.xlane.f32.xlu0 %v1385
        %v1429 = vpop.xlane.xlu0 %1428
        %1430 = vadd.xlane.f32.xlu0 %v1386
        %v1431 = vpop.xlane.xlu0 %1430
        %1432 = vadd.xlane.f32.xlu0 %v1387
        %v1433 = vpop.xlane.xlu0 %1432
        %1434 = vadd.xlane.f32.xlu0 %v1388
        %v1435 = vpop.xlane.xlu0 %1434
        %1436 = vadd.xlane.f32.xlu0 %v1389
        %v1437 = vpop.xlane.xlu0 %1436
        %1438 = vadd.xlane.f32.xlu0 %v1390
        %v1439 = vpop.xlane.xlu0 %1438
        %1440 = vadd.xlane.f32.xlu0 %v1391
        %v1441 = vpop.xlane.xlu0 %1440
        %1442 = vadd.xlane.f32.xlu0 %v1392
        %v1443 = vpop.xlane.xlu0 %1442
        %1444 = vadd.xlane.f32.xlu0 %v1393
        %v1445 = vpop.xlane.xlu0 %1444
        %1446 = vadd.xlane.f32.xlu0 %v1394
        %v1447 = vpop.xlane.xlu0 %1446
        %1448 = vadd.xlane.f32.xlu0 %v1395
        %v1449 = vpop.xlane.xlu0 %1448
        %1450 = vadd.xlane.f32.xlu0 %v1396
        %v1451 = vpop.xlane.xlu0 %1450
        %1452 = vadd.xlane.f32.xlu0 %v1397
        %v1453 = vpop.xlane.xlu0 %1452
        %1454 = vadd.xlane.f32.xlu0 %v1398
        %v1455 = vpop.xlane.xlu0 %1454
        %1456 = vadd.xlane.f32.xlu0 %v1399
        %v1457 = vpop.xlane.xlu0 %1456
        %1458 = vadd.xlane.f32.xlu0 %v1400
        %v1459 = vpop.xlane.xlu0 %1458
        %1460 = vadd.xlane.f32.xlu0 %v1401
        %v1461 = vpop.xlane.xlu0 %1460
        %1462 = vadd.xlane.f32.xlu0 %v1402
        %v1463 = vpop.xlane.xlu0 %1462
        %1464 = vadd.xlane.f32.xlu0 %v1403
        %v1465 = vpop.xlane.xlu0 %1464
        %1466 = vadd.xlane.f32.xlu0 %v1404
        %v1467 = vpop.xlane.xlu0 %1466
        %1468 = vadd.xlane.f32.xlu0 %v1405
        %v1469 = vpop.xlane.xlu0 %1468
        %v1470 = vld [vmem:[%s8] sm:$0x1]
        %v1472 = vlaneseq
        %v1473 = vshrl.u32 %v1472, 7
        %v1474 = vsub.s32 0, %v1473
        %v1475 = vrot.slane %v1470, %v1474
        %v1477 = vadd.f32 %v1407, %v1475
        %v1478 = vadd.f32 %v1409, %v1475
        %v1479 = vadd.f32 %v1411, %v1475
        %v1480 = vadd.f32 %v1413, %v1475
        %v1481 = vadd.f32 %v1415, %v1475
        %v1482 = vadd.f32 %v1417, %v1475
        %v1483 = vadd.f32 %v1419, %v1475
        %v1484 = vadd.f32 %v1421, %v1475
        %v1485 = vadd.f32 %v1423, %v1475
        %v1486 = vadd.f32 %v1425, %v1475
        %v1487 = vadd.f32 %v1427, %v1475
        %v1488 = vadd.f32 %v1429, %v1475
        %v1489 = vadd.f32 %v1431, %v1475
        %v1490 = vadd.f32 %v1433, %v1475
        %v1491 = vadd.f32 %v1435, %v1475
        %v1492 = vadd.f32 %v1437, %v1475
        %v1493 = vadd.f32 %v1439, %v1475
        %v1494 = vadd.f32 %v1441, %v1475
        %v1495 = vadd.f32 %v1443, %v1475
        %v1496 = vadd.f32 %v1445, %v1475
        %v1497 = vadd.f32 %v1447, %v1475
        %v1498 = vadd.f32 %v1449, %v1475
        %v1499 = vadd.f32 %v1451, %v1475
        %v1500 = vadd.f32 %v1453, %v1475
        %v1501 = vadd.f32 %v1455, %v1475
        %v1502 = vadd.f32 %v1457, %v1475
        %v1503 = vadd.f32 %v1459, %v1475
        %v1504 = vadd.f32 %v1461, %v1475
        %v1505 = vadd.f32 %v1463, %v1475
        %v1506 = vadd.f32 %v1465, %v1475
        %v1507 = vadd.f32 %v1467, %v1475
        %v1508 = vadd.f32 %v1469, %v1475
        %1509 = vst [vmem:[%s342] sm:$0xff] %v1477
        %1510 = vst [vmem:[%s342 + $0x8] sm:$0xff] %v1478
        %1511 = vst [vmem:[%s342 + $0x10] sm:$0xff] %v1479
        %1512 = vst [vmem:[%s342 + $0x18] sm:$0xff] %v1480
        %1513 = vst [vmem:[%s342 + $0x20] sm:$0xff] %v1481
        %1514 = vst [vmem:[%s342 + $0x28] sm:$0xff] %v1482
        %1515 = vst [vmem:[%s342 + $0x30] sm:$0xff] %v1483
        %1516 = vst [vmem:[%s342 + $0x38] sm:$0xff] %v1484
        %1517 = vst [vmem:[%s342 + $0x40] sm:$0xff] %v1485
        %1518 = vst [vmem:[%s342 + $0x48] sm:$0xff] %v1486
        %1519 = vst [vmem:[%s342 + $0x50] sm:$0xff] %v1487
        %1520 = vst [vmem:[%s342 + $0x58] sm:$0xff] %v1488
        %1521 = vst [vmem:[%s342 + $0x60] sm:$0xff] %v1489
        %1522 = vst [vmem:[%s342 + $0x68] sm:$0xff] %v1490
        %1523 = vst [vmem:[%s342 + $0x70] sm:$0xff] %v1491
        %1524 = vst [vmem:[%s342 + $0x78] sm:$0xff] %v1492
        %1525 = vst [vmem:[%s342 + $0x80] sm:$0xff] %v1493
        %1526 = vst [vmem:[%s342 + $0x88] sm:$0xff] %v1494
        %1527 = vst [vmem:[%s342 + $0x90] sm:$0xff] %v1495
        %1528 = vst [vmem:[%s342 + $0x98] sm:$0xff] %v1496
        %1529 = vst [vmem:[%s342 + $0xa0] sm:$0xff] %v1497
        %1530 = vst [vmem:[%s342 + $0xa8] sm:$0xff] %v1498
        %1531 = vst [vmem:[%s342 + $0xb0] sm:$0xff] %v1499
        %1532 = vst [vmem:[%s342 + $0xb8] sm:$0xff] %v1500
        %1533 = vst [vmem:[%s342 + $0xc0] sm:$0xff] %v1501
        %1534 = vst [vmem:[%s342 + $0xc8] sm:$0xff] %v1502
        %1535 = vst [vmem:[%s342 + $0xd0] sm:$0xff] %v1503
        %1536 = vst [vmem:[%s342 + $0xd8] sm:$0xff] %v1504
        %1537 = vst [vmem:[%s342 + $0xe0] sm:$0xff] %v1505
        %1538 = vst [vmem:[%s342 + $0xe8] sm:$0xff] %v1506
        %1539 = vst [vmem:[%s342 + $0xf0] sm:$0xff] %v1507
        %1540 = vst [vmem:[%s342 + $0xf8] sm:$0xff] %v1508
        %s1541 = sand.u32 %s230, 1
        %s1542 = scalar_lea.sflag [#allocation3], %s1541
        %s1543 = sand.u32 %s230, 1
        %s1544 = smul.addr %s1543, 256
        %s1545 = scalar_lea.vmem [#allocation2], %s1544
        // Predicated region
        $region57: #{tpu_custom_call.1} parent=55 // pred_check
          %p1546 = pneg %p240
        $region58: #{tpu_custom_call.1} parent=55 // pred_check_branch
          %1548 = sbr.rel (%p1546) target = $region60
        $region59: #{tpu_custom_call.1} parent=55 // pred_region
          %s1549 = smul.u32 32, %s23
          %s1551 = ssub.s32 4096, 4096
          %1552 = vsyncadd %s1542, %s1551
          %s1553 = smul.addr %s1549, 128
          %s1554 = scalar_lea.hbm %s9, %s1553
          %s1555 = sshll.u32 %s1545, 4
          %s1556 = int_to_ptr.vmem [resolvable:$true] %s1555
          %1561 = dma.vmem_to_hbm [thread:$0]  %s1556, 4096, %s1554, %s1542, 128, 128, 8
        $region60: #{tpu_custom_call.1} parent=55 // pred_fallthru
          _
      $region56: #{tpu_custom_call.1} parent=5 // pred_fallthru
        _
      %p1562 = scmp.le.s32.totalorder 2, %s18
      // Predicated region
      $region61: #{tpu_custom_call.1} parent=5 // pred_check
        %p1563 = pneg %p1562
      $region62: #{tpu_custom_call.1} parent=5 // pred_check_branch
        %1565 = sbr.rel (%p1563) target = $region64
      $region63: #{tpu_custom_call.1} parent=5 // pred_region
        %s1566 = ssub.s32 %s18, 2
        // Predicated region
        $region65: #{tpu_custom_call.1} parent=63 // pred_check
          %p1567 = pneg %p246
        $region66: #{tpu_custom_call.1} parent=63 // pred_check_branch
          %1569 = sbr.rel (%p1567) target = $region68
        $region67: #{tpu_custom_call.1} parent=63 // pred_region
          %s1570 = sand.u32 %s231, 1
          %s1571 = scalar_lea.sflag [#allocation3], %s1570
          %s1572 = sand.u32 %s231, 1
          %s1573 = smul.addr %s1572, 256
          %s1574 = scalar_lea.vmem [#allocation2], %s1573
          %1575 = dma.done %s1571, 4096
        $region68: #{tpu_custom_call.1} parent=63 // pred_fallthru
          _
      $region64: #{tpu_custom_call.1} parent=5 // pred_fallthru
        _
    $region6: #{tpu_custom_call.1} parent=1 // loop_footer
      %s22 = sadd.s32 1, %s18
    $region7: #{tpu_custom_call.1} parent=1 // loop_footer_branch
      %17 = sbr.rel target = $region3
    $region8: #{tpu_custom_call.1} parent=1 // loop_exit
      _
    %1576 = vsyncpa [#allocation3], 1
    %s1577 = scalar_lea.sflag [#allocation3], 1
    %1578 = vsyncpa %s1577, 1

</llo_original>
